<compile_context>
chip_gen: v5e
topology: v5e:2x2
jax: 0.10.0
libtpu: 0.0.40
codegen_flags: <defaults>
</compile_context>

<pallas_src>
import functools

import jax
import jax.numpy as jnp
from jax.experimental import pallas as pl
from jax.experimental.pallas import tpu as pltpu


def _plan_depth_tiling(D, C, HW, itemsize, gran, target_bytes):
    """Pick (tile_d, D_pad): tile_d is a multiple of `gran`, D_pad a multiple of tile_d."""
    # Working-set bytes contributed per depth row: double-buffered logits block,
    # double-buffered int32 targets block, and the f32 exp-cache scratch.
    row_bytes = C * HW * (2 * int(itemsize) + 4) + 2 * HW * 4
    cap = max(gran, (int(target_bytes) // max(row_bytes, 1)) // gran * gran)
    d_ceil = pl.cdiv(D, gran) * gran
    if d_ceil <= cap:
        return d_ceil, d_ceil                      # single (possibly padded) tile
    # Prefer an exact divisor of D (no padded rows at all).
    t = (min(cap, D) // gran) * gran
    while t >= gran:
        if D % t == 0:
            return t, D
        t -= gran
    # Ragged depth: tile at the cap and edge-pad D up to a multiple of it.
    return cap, pl.cdiv(D, cap) * cap


def _loss_stats_kernel(logits_ref, tgt_ref, colrow_ref, out_ref, halo_ref, exp_ref, *,
                       C, H, W, D, tile_d, num_dt, pad_d, bf16_max):
    """Per-(batch, depth-tile) sufficient statistics.

    logits_ref: (C, tile_d, HW)  wire dtype (bf16 / f32), upcast per plane in-kernel
    tgt_ref:    (tile_d, HW)     int32 class indices
    colrow_ref: (2, HW)          int32 [col=j%W ; row=j//W] lane index map
    out_ref:    (3C + 4, HW)     f32 per-batch partial stats (accumulated over dt)
    halo_ref:   (C, HW)          f32 previous depth tile's last row of softmax probs
    exp_ref:    (C, tile_d, HW)  f32 cache of exp(x_c - m)
    """
    dt = pl.program_id(1)
    HW = H * W
    f32 = jnp.float32

    t = tgt_ref[...]                                   # (tile_d, HW) int32

    # ---- pass 1: running max over classes (bf16 max is exact; upcast once) ----
    if bf16_max:
        m_w = logits_ref[0]
        for c in range(1, C):
            m_w = jnp.maximum(m_w, logits_ref[c])
        m = m_w.astype(f32)
    else:
        m = logits_ref[0].astype(f32)
        for c in range(1, C):
            m = jnp.maximum(m, logits_ref[c].astype(f32))

    # ---- pass 2: sum of exp, exp-plane cache, logit of the target class ----
    sumexp = jnp.zeros((tile_d, HW), f32)
    xt = jnp.zeros((tile_d, HW), f32)
    for c in range(C):
        xc = logits_ref[c].astype(f32)
        e = jnp.exp(xc - m)
        exp_ref[c] = e                                 # cache: pass 3 never re-reads logits
        sumexp = sumexp + e
        xt = xt + jnp.where(t == c, xc, 0.0)

    # Approximate reciprocal (EUP slot) + one Newton-Raphson step -> ~f32 accuracy,
    # no per-voxel VALU divide.
    y = pl.reciprocal(sumexp, approx=True)
    inv_sum = y * (2.0 - sumexp * y)
    lse = m + jnp.log(sumexp)                          # logsumexp, (tile_d, HW)

    # ---- validity mask for edge-padded depth rows (only traced if padding exists) ----
    if pad_d:
        gdepth = jax.lax.broadcasted_iota(jnp.int32, (tile_d, HW), 0) + dt * tile_d
        valid = (gdepth < D).astype(f32)               # (tile_d, HW)

    # ---- full-width lane masks for the H/W boundary diffs ----
    # Derived from the SAME pltpu.roll applied to the col/row index map, so the
    # neighbor-pair set is correct regardless of the hardware rotate direction.
    cr = colrow_ref[...]                               # (2, HW) int32
    col = cr[0:1, :]
    row = cr[1:2, :]
    if W > 1:
        cr_w = pltpu.roll(cr, shift=1, axis=1)
        wpair = (cr_w[1:2, :] == row) & (jnp.abs(cr_w[0:1, :] - col) == 1)
        wmask = wpair.astype(f32) * (0.5 if HW == 2 else 1.0)  # HW==2: mutual partners
        if pad_d:
            wmask = wmask * valid                      # (tile_d, HW)
        else:
            wmask = jnp.broadcast_to(wmask, (tile_d, HW))  # hoisted: one broadcast, not C
    if H > 1:
        cr_h = pltpu.roll(cr, shift=W, axis=1)
        hpair = (cr_h[0:1, :] == col) & (jnp.abs(cr_h[1:2, :] - row) == 1)
        hmask = hpair.astype(f32) * (0.5 if H == 2 else 1.0)  # H==2: mutual partners
        if pad_d:
            hmask = hmask * valid
        else:
            hmask = jnp.broadcast_to(hmask, (tile_d, HW))

    if num_dt > 1:
        # NOTE: uninitialized scratch at dt==0 -- must stay behind the jnp.where select
        # below (do not turn it into a multiply-by-flag).  The depth-tile axis must
        # remain the innermost, sequentially iterated ("arbitrary") grid axis.
        halo_prev = halo_ref[...]                      # read before any halo writes
        use_halo = dt > 0

    gd_row = jnp.zeros((1, HW), f32)
    gh_row = jnp.zeros((1, HW), f32)
    gw_row = jnp.zeros((1, HW), f32)
    inter_rows, psum_rows, osum_rows = [], [], []

    # ---- pass 3: per-class statistics from the cached exp planes ----
    for c in range(C):
        p_c = exp_ref[c] * inv_sum                     # softmax prob of class c
        oh_c = (t == c).astype(f32)
        if pad_d:
            p_s = p_c * valid
            oh_s = oh_c * valid
        else:
            p_s, oh_s = p_c, oh_c

        # Lane-resident per-class stats: reduce over sublanes (depth) only; the final
        # cross-lane / cross-batch reduce happens in JAX on the (3C+4, HW) output.
        inter_rows.append(jnp.sum(p_s * oh_c, axis=0, keepdims=True))
        psum_rows.append(jnp.sum(p_s, axis=0, keepdims=True))
        osum_rows.append(jnp.sum(oh_s, axis=0, keepdims=True))

        # ---- boundary gradients of the softmax probabilities ----
        if tile_d > 1:                                 # D-direction: sublane diffs
            gd_row = gd_row + jnp.sum(jnp.abs(p_c[1:, :] - p_c[:-1, :]),
                                      axis=0, keepdims=True)
        if num_dt > 1:                                 # seam with the previous depth tile
            prev_last = jnp.where(use_halo, halo_prev[c:c + 1, :], p_c[0:1, :])
            gd_row = gd_row + jnp.abs(prev_last - p_c[0:1, :])
            halo_ref[c:c + 1, :] = p_c[tile_d - 1:tile_d, :]
        if H > 1:                                      # H-direction: lane roll by W (XLU)
            gh_row = gh_row + jnp.sum(
                jnp.abs(pltpu.roll(p_c, shift=W, axis=1) - p_c) * hmask,
                axis=0, keepdims=True)
        if W > 1:                                      # W-direction: lane roll by 1 (XLU)
            gw_row = gw_row + jnp.sum(
                jnp.abs(pltpu.roll(p_c, shift=1, axis=1) - p_c) * wmask,
                axis=0, keepdims=True)

    # Cross-entropy numerator: sum over voxels of (logsumexp - x[target]).
    ce = lse - xt
    if pad_d:
        ce = ce * valid
    ce_row = jnp.sum(ce, axis=0, keepdims=True)

    # One aligned full-block store / accumulate instead of 3C+4 single-sublane stores.
    stats = jnp.concatenate(
        inter_rows + psum_rows + osum_rows + [ce_row, gd_row, gh_row, gw_row], axis=0)

    if num_dt == 1:
        out_ref[...] = stats
    else:
        @pl.when(dt == 0)
        def _init():
            out_ref[...] = stats

        @pl.when(dt > 0)
        def _accum():
            out_ref[...] = out_ref[...] + stats


def _run_stats(logits, targets, d_tile=None, target_bytes=12 << 20):
    """logits: (B, C, D, H, W) float; targets: (B, D, H, W) int -> (B, 3C+4, H*W) stats."""
    B, C, D, H, W = logits.shape
    HW = H * W

    if not jnp.issubdtype(logits.dtype, jnp.floating):
        logits = logits.astype(jnp.float32)
    itemsize = logits.dtype.itemsize
    gran = 16 if itemsize == 2 else 8                  # bf16 packs 2 rows per sublane

    if d_tile is None:
        tile_d, D_pad = _plan_depth_tiling(D, C, HW, itemsize, gran, target_bytes)
    else:
        tile_d = int(d_tile)
        assert tile_d % gran == 0, f"d_tile must be a multiple of {gran}"
        D_pad = pl.cdiv(D, tile_d) * tile_d
    num_dt = D_pad // tile_d
    pad_d = D_pad - D
    acc_rows = 3 * C + 4

    logits4 = logits.reshape(B, C, D, HW)              # keep wire dtype (bf16 stays bf16)
    targets3 = targets.reshape(B, D, HW).astype(jnp.int32)
    if pad_d:
        # Edge padding: padded depth rows are exact copies of the last real row, so
        # every D-direction |diff| they touch is exactly zero; their H/W/stat
        # contributions are masked out inside the kernel.
        logits4 = jnp.pad(logits4, ((0, 0), (0, 0), (0, pad_d), (0, 0)), mode="edge")
        targets3 = jnp.pad(targets3, ((0, 0), (0, pad_d), (0, 0)), mode="edge")

    lane_ids = jnp.arange(HW, dtype=jnp.int32)
    colrow = jnp.stack([lane_ids % W, lane_ids // W], axis=0)   # (2, HW) int32

    kernel = functools.partial(
        _loss_stats_kernel, C=C, H=H, W=W, D=D, tile_d=tile_d, num_dt=num_dt,
        pad_d=pad_d, bf16_max=(logits4.dtype == jnp.bfloat16))

    grid_spec = pltpu.PrefetchScalarGridSpec(
        num_scalar_prefetch=0,
        grid=(B, num_dt),                              # dt MUST stay innermost + arbitrary
        in_specs=[
            pl.BlockSpec((None, C, tile_d, HW), lambda b, d: (b, 0, d, 0)),
            pl.BlockSpec((None, tile_d, HW), lambda b, d: (b, d, 0)),
            pl.BlockSpec((2, HW), lambda b, d: (0, 0)),
        ],
        out_specs=pl.BlockSpec((None, acc_rows, HW), lambda b, d: (b, 0, 0)),
        scratch_shapes=[
            pltpu.VMEM((C, HW), jnp.float32),          # D-seam halo (prev tile last row)
            pltpu.VMEM((C, tile_d, HW), jnp.float32),  # exp(x - m) cache
        ],
    )

    # Explicit VMEM budget: double-buffered logits/targets/out + exp cache + halo.
    need = (2 * C * tile_d * HW * itemsize + 2 * tile_d * HW * 4
            + 2 * acc_rows * HW * 4 + C * tile_d * HW * 4 + C * HW * 4)
    vmem_limit = int(max(32 << 20, min(need + (16 << 20), 48 << 20)))

    nvox = B * C * D_pad * HW
    cost = pl.CostEstimate(
        flops=int(nvox * 24),
        transcendentals=int(nvox + 2 * B * D_pad * HW),
        bytes_accessed=int(logits4.size * logits4.dtype.itemsize
                           + targets3.size * 4 + B * acc_rows * HW * 4),
    )

    # TODO(synk): on v7x (2 TensorCores) a batch of 1 leaves a core idle; add a second
    # "parallel" axis by splitting HW at an H boundary (with an H-seam halo) if needed.
    return pl.pallas_call(
        kernel,
        grid_spec=grid_spec,
        out_shape=jax.ShapeDtypeStruct((B, acc_rows, HW), jnp.float32),
        compiler_params=pltpu.CompilerParams(
            dimension_semantics=("parallel", "arbitrary"),
            vmem_limit_bytes=vmem_limit),
        cost_estimate=cost,
    )(logits4, targets3, colrow)


def refineformer3d_loss(
    outputs,
    targets,
    dice_weight=1.0,
    tversky_weight=1.0,
    ce_weight=1.0,
    boundary_weight=1.0,
    aux_weight=0.4,
    smooth=1e-5,
    alpha=0.7,
    beta=0.3,
    gamma=0.75,
    _d_tile_override=None,
):
    """JAX/Pallas equivalent of RefineFormer3DLoss.forward (tensor / 'main'-only path)."""
    if isinstance(outputs, dict):
        main_output = outputs["main"]
        # TODO(synk): aux2/aux3 path needs trilinear F.interpolate; not implemented here.
    else:
        main_output = outputs

    if targets.ndim == 5:
        targets = jnp.squeeze(targets, axis=1)

    B, C, D, H, W = main_output.shape
    stats = _run_stats(main_output, targets, d_tile=_d_tile_override)
    s = jnp.sum(stats, axis=(0, 2))                    # final cross-lane / cross-batch reduce

    inter = s[0:C]
    psum = s[C:2 * C]
    osum = s[2 * C:3 * C]
    ce_sum = s[3 * C]
    gd_sum = s[3 * C + 1]
    gh_sum = s[3 * C + 2]
    gw_sum = s[3 * C + 3]

    # Dice loss
    dice = (2.0 * inter + smooth) / (psum + osum + smooth)
    dice_loss = 1.0 - jnp.mean(dice)

    # Focal Tversky loss
    tp = inter
    fp = psum - inter
    fn = osum - inter
    tversky = (tp + smooth) / (tp + alpha * fp + beta * fn + smooth)
    tversky_loss = jnp.mean((1.0 - tversky) ** gamma)

    # Cross entropy (mean over all voxels)
    ce_loss = ce_sum / (B * D * H * W)

    # Boundary loss: mean |grad| of the softmax probabilities along D, H, W
    boundary_loss = (
        gd_sum / (B * C * (D - 1) * H * W)
        + gh_sum / (B * C * D * (H - 1) * W)
        + gw_sum / (B * C * D * H * (W - 1))
    )

    loss_main = (
        dice_weight * dice_loss
        + tversky_weight * tversky_loss
        + ce_weight * ce_loss
    )
    aux_loss = 0.0  # tensor-input path has no aux heads
    return loss_main + aux_weight * aux_loss + boundary_weight * boundary_loss


# ------------------------- pure-JAX reference for sanity -------------------------
def _reference_loss(logits, targets, smooth=1e-5, alpha=0.7, beta=0.3, gamma=0.75):
    C = logits.shape[1]
    probs = jax.nn.softmax(logits.astype(jnp.float32), axis=1)
    onehot = jax.nn.one_hot(targets, C, axis=1, dtype=jnp.float32)
    dims = (0, 2, 3, 4)
    inter = jnp.sum(probs * onehot, dims)
    card = jnp.sum(probs + onehot, dims)
    dice_loss = 1.0 - jnp.mean((2.0 * inter + smooth) / (card + smooth))
    tp = inter
    fp = jnp.sum(probs * (1.0 - onehot), dims)
    fn = jnp.sum((1.0 - probs) * onehot, dims)
    tversky = (tp + smooth) / (tp + alpha * fp + beta * fn + smooth)
    tversky_loss = jnp.mean((1.0 - tversky) ** gamma)
    logp = jax.nn.log_softmax(logits.astype(jnp.float32), axis=1)
    ce_loss = -jnp.mean(jnp.sum(onehot * logp, axis=1))
    boundary = (
        jnp.mean(jnp.abs(probs[:, :, :-1] - probs[:, :, 1:]))
        + jnp.mean(jnp.abs(probs[:, :, :, :-1] - probs[:, :, :, 1:]))
        + jnp.mean(jnp.abs(probs[:, :, :, :, :-1] - probs[:, :, :, :, 1:]))
    )
    return dice_loss + tversky_loss + ce_loss + boundary


if __name__ == "__main__":
    key = jax.random.PRNGKey(0)
    k1, k2, k3, k4, k5, k6 = jax.random.split(key, 6)

    # Case 1: single depth tile, dict-input path.  (B, C, D, H, W) = (2, 4, 8, 16, 16)
    logits = jax.random.normal(k1, (2, 4, 8, 16, 16), dtype=jnp.float32)
    targets = jax.random.randint(k2, (2, 8, 16, 16), 0, 4, dtype=jnp.int32)
    loss = jax.block_until_ready(refineformer3d_loss({"main": logits}, targets))
    ref = jax.block_until_ready(_reference_loss(logits, targets))
    assert jnp.isfinite(loss), "loss is not finite"
    assert jnp.allclose(loss, ref, rtol=2e-4, atol=2e-5), (loss, ref)

    # Case 2: forced depth tiling (two tiles) to exercise the halo / seam path.
    logits2 = jax.random.normal(k3, (2, 4, 16, 16, 16), dtype=jnp.float32)
    targets2 = jax.random.randint(k4, (2, 16, 16, 16), 0, 4, dtype=jnp.int32)
    loss2 = jax.block_until_ready(
        refineformer3d_loss(logits2, targets2, _d_tile_override=8))
    ref2 = jax.block_until_ready(_reference_loss(logits2, targets2))
    assert jnp.isfinite(loss2), "tiled loss is not finite"
    assert jnp.allclose(loss2, ref2, rtol=2e-4, atol=2e-5), (loss2, ref2)

    # Case 3: ragged depth (D=12) with forced tiling -> edge padding, validity masking
    # and the tile-seam halo all exercised together.
    logits_r = jax.random.normal(k5, (2, 4, 12, 16, 16), dtype=jnp.float32)
    targets_r = jax.random.randint(k6, (2, 12, 16, 16), 0, 4, dtype=jnp.int32)
    loss3 = jax.block_until_ready(
        refineformer3d_loss(logits_r, targets_r, _d_tile_override=8))
    ref3 = jax.block_until_ready(_reference_loss(logits_r, targets_r))
    assert jnp.isfinite(loss3), "padded loss is not finite"
    assert jnp.allclose(loss3, ref3, rtol=2e-4, atol=2e-5), (loss3, ref3)

    print("KERNEL_OK")
</pallas_src>

<mosaic_0001>
module attributes {stable_mosaic.version = 11 : i64} {
  func.func @_loss_stats_kernel(%arg0: i32, %arg1: i32, %arg2: memref<1x4x8x256xf32, #tpu.memory_space<vmem>>, %arg3: memref<1x8x256xi32, #tpu.memory_space<vmem>>, %arg4: memref<2x256xi32, #tpu.memory_space<vmem>>, %arg5: memref<1x16x256xf32, #tpu.memory_space<vmem>>, %arg6: memref<4x256xf32, #tpu.memory_space<vmem>>, %arg7: memref<4x8x256xf32, #tpu.memory_space<vmem>>) attributes {dimension_semantics = [#tpu.dimension_semantics<parallel>, #tpu.dimension_semantics<arbitrary>], iteration_bounds = array<i64: 2, 1>, scalar_prefetch = 0 : i64, scratch_operands = 2 : i64, tpu.core_type = #tpu.core_type<tc>, window_params = [{transform_indices = @transform_0, window_bounds = array<i64: 1, 4, 8, 256>}, {transform_indices = @transform_1, window_bounds = array<i64: 1, 8, 256>}, {pipeline_mode = #tpu.pipeline_mode<synchronous>, transform_indices = @transform_2, window_bounds = array<i64: 2, 256>}, {transform_indices = @transform_3, window_bounds = array<i64: 1, 16, 256>}]} {
    %c0 = arith.constant 0 : index
    %c0_0 = arith.constant 0 : index
    %c0_1 = arith.constant 0 : index
    %0 = vector.load %arg3[%c0, %c0_0, %c0_1] : memref<1x8x256xi32, #tpu.memory_space<vmem>>, vector<1x8x256xi32>
    %1 = vector.shape_cast %0 : vector<1x8x256xi32> to vector<8x256xi32>
    %c0_2 = arith.constant 0 : index
    %c0_3 = arith.constant 0 : index
    %c0_4 = arith.constant 0 : index
    %c0_5 = arith.constant 0 : index
    %2 = vector.load %arg2[%c0_2, %c0_3, %c0_4, %c0_5] : memref<1x4x8x256xf32, #tpu.memory_space<vmem>>, vector<1x1x8x256xf32>
    %3 = vector.shape_cast %2 : vector<1x1x8x256xf32> to vector<8x256xf32>
    %c0_6 = arith.constant 0 : index
    %c1 = arith.constant 1 : index
    %c0_7 = arith.constant 0 : index
    %c0_8 = arith.constant 0 : index
    %4 = vector.load %arg2[%c0_6, %c1, %c0_7, %c0_8] : memref<1x4x8x256xf32, #tpu.memory_space<vmem>>, vector<1x1x8x256xf32>
    %5 = vector.shape_cast %4 : vector<1x1x8x256xf32> to vector<8x256xf32>
    %6 = arith.maximumf %3, %5 : vector<8x256xf32>
    %c0_9 = arith.constant 0 : index
    %c2 = arith.constant 2 : index
    %c0_10 = arith.constant 0 : index
    %c0_11 = arith.constant 0 : index
    %7 = vector.load %arg2[%c0_9, %c2, %c0_10, %c0_11] : memref<1x4x8x256xf32, #tpu.memory_space<vmem>>, vector<1x1x8x256xf32>
    %8 = vector.shape_cast %7 : vector<1x1x8x256xf32> to vector<8x256xf32>
    %9 = arith.maximumf %6, %8 : vector<8x256xf32>
    %c0_12 = arith.constant 0 : index
    %c3 = arith.constant 3 : index
    %c0_13 = arith.constant 0 : index
    %c0_14 = arith.constant 0 : index
    %10 = vector.load %arg2[%c0_12, %c3, %c0_13, %c0_14] : memref<1x4x8x256xf32, #tpu.memory_space<vmem>>, vector<1x1x8x256xf32>
    %11 = vector.shape_cast %10 : vector<1x1x8x256xf32> to vector<8x256xf32>
    %12 = arith.maximumf %9, %11 : vector<8x256xf32>
    %cst = arith.constant 0.000000e+00 : f32
    %13 = vector.broadcast %cst : f32 to vector<8x256xf32>
    %cst_15 = arith.constant 0.000000e+00 : f32
    %14 = vector.broadcast %cst_15 : f32 to vector<8x256xf32>
    %c0_16 = arith.constant 0 : index
    %c0_17 = arith.constant 0 : index
    %c0_18 = arith.constant 0 : index
    %c0_19 = arith.constant 0 : index
    %15 = vector.load %arg2[%c0_16, %c0_17, %c0_18, %c0_19] : memref<1x4x8x256xf32, #tpu.memory_space<vmem>>, vector<1x1x8x256xf32>
    %16 = vector.shape_cast %15 : vector<1x1x8x256xf32> to vector<8x256xf32>
    %17 = arith.subf %16, %12 : vector<8x256xf32>
    %18 = math.exp %17 : vector<8x256xf32>
    %c0_20 = arith.constant 0 : index
    %c0_21 = arith.constant 0 : index
    %c0_22 = arith.constant 0 : index
    %19 = vector.load %arg7[%c0_20, %c0_21, %c0_22] : memref<4x8x256xf32, #tpu.memory_space<vmem>>, vector<1x8x256xf32>
    %20 = vector.shape_cast %19 : vector<1x8x256xf32> to vector<8x256xf32>
    %21 = vector.shape_cast %18 : vector<8x256xf32> to vector<1x8x256xf32>
    tpu.vector_store %arg7[%c0_20, %c0_21, %c0_22], %21 {strides = array<i32>} : memref<4x8x256xf32, #tpu.memory_space<vmem>>, vector<1x8x256xf32>,
    %22 = arith.addf %13, %18 : vector<8x256xf32>
    %c0_i32 = arith.constant 0 : i32
    %23 = vector.broadcast %c0_i32 : i32 to vector<8x256xi32>
    %24 = arith.cmpi eq, %1, %23 : vector<8x256xi32>
    %cst_23 = arith.constant 0.000000e+00 : f32
    %25 = vector.broadcast %cst_23 : f32 to vector<8x256xf32>
    %26 = arith.select %24, %16, %25 : vector<8x256xi1>, vector<8x256xf32>
    %27 = arith.addf %14, %26 : vector<8x256xf32>
    %c0_24 = arith.constant 0 : index
    %c1_25 = arith.constant 1 : index
    %c0_26 = arith.constant 0 : index
    %c0_27 = arith.constant 0 : index
    %28 = vector.load %arg2[%c0_24, %c1_25, %c0_26, %c0_27] : memref<1x4x8x256xf32, #tpu.memory_space<vmem>>, vector<1x1x8x256xf32>
    %29 = vector.shape_cast %28 : vector<1x1x8x256xf32> to vector<8x256xf32>
    %30 = arith.subf %29, %12 : vector<8x256xf32>
    %31 = math.exp %30 : vector<8x256xf32>
    %c1_28 = arith.constant 1 : index
    %c0_29 = arith.constant 0 : index
    %c0_30 = arith.constant 0 : index
    %32 = vector.load %arg7[%c1_28, %c0_29, %c0_30] : memref<4x8x256xf32, #tpu.memory_space<vmem>>, vector<1x8x256xf32>
    %33 = vector.shape_cast %32 : vector<1x8x256xf32> to vector<8x256xf32>
    %34 = vector.shape_cast %31 : vector<8x256xf32> to vector<1x8x256xf32>
    tpu.vector_store %arg7[%c1_28, %c0_29, %c0_30], %34 {strides = array<i32>} : memref<4x8x256xf32, #tpu.memory_space<vmem>>, vector<1x8x256xf32>,
    %35 = arith.addf %22, %31 : vector<8x256xf32>
    %c1_i32 = arith.constant 1 : i32
    %36 = vector.broadcast %c1_i32 : i32 to vector<8x256xi32>
    %37 = arith.cmpi eq, %1, %36 : vector<8x256xi32>
    %cst_31 = arith.constant 0.000000e+00 : f32
    %38 = vector.broadcast %cst_31 : f32 to vector<8x256xf32>
    %39 = arith.select %37, %29, %38 : vector<8x256xi1>, vector<8x256xf32>
    %40 = arith.addf %27, %39 : vector<8x256xf32>
    %c0_32 = arith.constant 0 : index
    %c2_33 = arith.constant 2 : index
    %c0_34 = arith.constant 0 : index
    %c0_35 = arith.constant 0 : index
    %41 = vector.load %arg2[%c0_32, %c2_33, %c0_34, %c0_35] : memref<1x4x8x256xf32, #tpu.memory_space<vmem>>, vector<1x1x8x256xf32>
    %42 = vector.shape_cast %41 : vector<1x1x8x256xf32> to vector<8x256xf32>
    %43 = arith.subf %42, %12 : vector<8x256xf32>
    %44 = math.exp %43 : vector<8x256xf32>
    %c2_36 = arith.constant 2 : index
    %c0_37 = arith.constant 0 : index
    %c0_38 = arith.constant 0 : index
    %45 = vector.load %arg7[%c2_36, %c0_37, %c0_38] : memref<4x8x256xf32, #tpu.memory_space<vmem>>, vector<1x8x256xf32>
    %46 = vector.shape_cast %45 : vector<1x8x256xf32> to vector<8x256xf32>
    %47 = vector.shape_cast %44 : vector<8x256xf32> to vector<1x8x256xf32>
    tpu.vector_store %arg7[%c2_36, %c0_37, %c0_38], %47 {strides = array<i32>} : memref<4x8x256xf32, #tpu.memory_space<vmem>>, vector<1x8x256xf32>,
    %48 = arith.addf %35, %44 : vector<8x256xf32>
    %c2_i32 = arith.constant 2 : i32
    %49 = vector.broadcast %c2_i32 : i32 to vector<8x256xi32>
    %50 = arith.cmpi eq, %1, %49 : vector<8x256xi32>
    %cst_39 = arith.constant 0.000000e+00 : f32
    %51 = vector.broadcast %cst_39 : f32 to vector<8x256xf32>
    %52 = arith.select %50, %42, %51 : vector<8x256xi1>, vector<8x256xf32>
    %53 = arith.addf %40, %52 : vector<8x256xf32>
    %c0_40 = arith.constant 0 : index
    %c3_41 = arith.constant 3 : index
    %c0_42 = arith.constant 0 : index
    %c0_43 = arith.constant 0 : index
    %54 = vector.load %arg2[%c0_40, %c3_41, %c0_42, %c0_43] : memref<1x4x8x256xf32, #tpu.memory_space<vmem>>, vector<1x1x8x256xf32>
    %55 = vector.shape_cast %54 : vector<1x1x8x256xf32> to vector<8x256xf32>
    %56 = arith.subf %55, %12 : vector<8x256xf32>
    %57 = math.exp %56 : vector<8x256xf32>
    %c3_44 = arith.constant 3 : index
    %c0_45 = arith.constant 0 : index
    %c0_46 = arith.constant 0 : index
    %58 = vector.load %arg7[%c3_44, %c0_45, %c0_46] : memref<4x8x256xf32, #tpu.memory_space<vmem>>, vector<1x8x256xf32>
    %59 = vector.shape_cast %58 : vector<1x8x256xf32> to vector<8x256xf32>
    %60 = vector.shape_cast %57 : vector<8x256xf32> to vector<1x8x256xf32>
    tpu.vector_store %arg7[%c3_44, %c0_45, %c0_46], %60 {strides = array<i32>} : memref<4x8x256xf32, #tpu.memory_space<vmem>>, vector<1x8x256xf32>,
    %61 = arith.addf %48, %57 : vector<8x256xf32>
    %c3_i32 = arith.constant 3 : i32
    %62 = vector.broadcast %c3_i32 : i32 to vector<8x256xi32>
    %63 = arith.cmpi eq, %1, %62 : vector<8x256xi32>
    %cst_47 = arith.constant 0.000000e+00 : f32
    %64 = vector.broadcast %cst_47 : f32 to vector<8x256xf32>
    %65 = arith.select %63, %55, %64 : vector<8x256xi1>, vector<8x256xf32>
    %66 = arith.addf %53, %65 : vector<8x256xf32>
    %67 = tpu.reciprocal %61 {approx = true} : vector<8x256xf32> -> vector<8x256xf32>
    %68 = arith.mulf %61, %67 : vector<8x256xf32>
    %cst_48 = arith.constant 2.000000e+00 : f32
    %69 = vector.broadcast %cst_48 : f32 to vector<8x256xf32>
    %70 = arith.subf %69, %68 : vector<8x256xf32>
    %71 = arith.mulf %67, %70 : vector<8x256xf32>
    %72 = math.log %61 : vector<8x256xf32>
    %73 = arith.addf %12, %72 : vector<8x256xf32>
    %c0_49 = arith.constant 0 : index
    %c0_50 = arith.constant 0 : index
    %74 = vector.load %arg4[%c0_49, %c0_50] : memref<2x256xi32, #tpu.memory_space<vmem>>, vector<2x256xi32>
    %75 = vector.extract_strided_slice %74 {offsets = [0, 0], sizes = [1, 256], strides = [1, 1]} : vector<2x256xi32> to vector<1x256xi32>
    %76 = vector.extract_strided_slice %74 {offsets = [1, 0], sizes = [1, 256], strides = [1, 1]} : vector<2x256xi32> to vector<1x256xi32>
    %c1_i32_51 = arith.constant 1 : i32
    %77 = tpu.dynamic_rotate %74 by %c1_i32_51 dim 1 : vector<2x256xi32>, i32 -> vector<2x256xi32>
    %78 = vector.extract_strided_slice %77 {offsets = [1, 0], sizes = [1, 256], strides = [1, 1]} : vector<2x256xi32> to vector<1x256xi32>
    %79 = arith.cmpi eq, %78, %76 : vector<1x256xi32>
    %80 = vector.extract_strided_slice %77 {offsets = [0, 0], sizes = [1, 256], strides = [1, 1]} : vector<2x256xi32> to vector<1x256xi32>
    %81 = arith.subi %80, %75 : vector<1x256xi32>
    %82 = math.absi %81 : vector<1x256xi32>
    %c1_i32_52 = arith.constant 1 : i32
    %83 = vector.broadcast %c1_i32_52 : i32 to vector<1x256xi32>
    %84 = arith.cmpi eq, %82, %83 : vector<1x256xi32>
    %85 = arith.andi %79, %84 : vector<1x256xi1>
    %86 = arith.extui %85 : vector<1x256xi1> to vector<1x256xi32>
    %87 = arith.sitofp %86 : vector<1x256xi32> to vector<1x256xf32>
    %cst_53 = arith.constant 1.000000e+00 : f32
    %88 = vector.broadcast %cst_53 : f32 to vector<1x256xf32>
    %89 = arith.mulf %87, %88 : vector<1x256xf32>
    %90 = vector.shape_cast %89 : vector<1x256xf32> to vector<1x256xf32>
    %91 = vector.broadcast %90 : vector<1x256xf32> to vector<8x256xf32>
    %c16_i32 = arith.constant 16 : i32
    %92 = tpu.dynamic_rotate %74 by %c16_i32 dim 1 : vector<2x256xi32>, i32 -> vector<2x256xi32>
    %93 = vector.extract_strided_slice %92 {offsets = [0, 0], sizes = [1, 256], strides = [1, 1]} : vector<2x256xi32> to vector<1x256xi32>
    %94 = arith.cmpi eq, %93, %75 : vector<1x256xi32>
    %95 = vector.extract_strided_slice %92 {offsets = [1, 0], sizes = [1, 256], strides = [1, 1]} : vector<2x256xi32> to vector<1x256xi32>
    %96 = arith.subi %95, %76 : vector<1x256xi32>
    %97 = math.absi %96 : vector<1x256xi32>
    %c1_i32_54 = arith.constant 1 : i32
    %98 = vector.broadcast %c1_i32_54 : i32 to vector<1x256xi32>
    %99 = arith.cmpi eq, %97, %98 : vector<1x256xi32>
    %100 = arith.andi %94, %99 : vector<1x256xi1>
    %101 = arith.extui %100 : vector<1x256xi1> to vector<1x256xi32>
    %102 = arith.sitofp %101 : vector<1x256xi32> to vector<1x256xf32>
    %cst_55 = arith.constant 1.000000e+00 : f32
    %103 = vector.broadcast %cst_55 : f32 to vector<1x256xf32>
    %104 = arith.mulf %102, %103 : vector<1x256xf32>
    %105 = vector.shape_cast %104 : vector<1x256xf32> to vector<1x256xf32>
    %106 = vector.broadcast %105 : vector<1x256xf32> to vector<8x256xf32>
    %cst_56 = arith.constant 0.000000e+00 : f32
    %107 = vector.broadcast %cst_56 : f32 to vector<1x256xf32>
    %cst_57 = arith.constant 0.000000e+00 : f32
    %108 = vector.broadcast %cst_57 : f32 to vector<1x256xf32>
    %cst_58 = arith.constant 0.000000e+00 : f32
    %109 = vector.broadcast %cst_58 : f32 to vector<1x256xf32>
    %c0_59 = arith.constant 0 : index
    %c0_60 = arith.constant 0 : index
    %c0_61 = arith.constant 0 : index
    %110 = vector.load %arg7[%c0_59, %c0_60, %c0_61] : memref<4x8x256xf32, #tpu.memory_space<vmem>>, vector<1x8x256xf32>
    %111 = vector.shape_cast %110 : vector<1x8x256xf32> to vector<8x256xf32>
    %112 = arith.mulf %111, %71 : vector<8x256xf32>
    %c0_i32_62 = arith.constant 0 : i32
    %113 = vector.broadcast %c0_i32_62 : i32 to vector<8x256xi32>
    %114 = arith.cmpi eq, %1, %113 : vector<8x256xi32>
    %115 = arith.extui %114 : vector<8x256xi1> to vector<8x256xi32>
    %116 = arith.sitofp %115 : vector<8x256xi32> to vector<8x256xf32>
    %117 = arith.mulf %112, %116 : vector<8x256xf32>
    %cst_63 = arith.constant dense<0.000000e+00> : vector<256xf32>
    %118 = vector.multi_reduction <add>, %117, %cst_63 [0] : vector<8x256xf32> to vector<256xf32>
    %119 = vector.shape_cast %118 : vector<256xf32> to vector<1x256xf32>
    %cst_64 = arith.constant dense<0.000000e+00> : vector<256xf32>
    %120 = vector.multi_reduction <add>, %112, %cst_64 [0] : vector<8x256xf32> to vector<256xf32>
    %121 = vector.shape_cast %120 : vector<256xf32> to vector<1x256xf32>
    %cst_65 = arith.constant dense<0.000000e+00> : vector<256xf32>
    %122 = vector.multi_reduction <add>, %116, %cst_65 [0] : vector<8x256xf32> to vector<256xf32>
    %123 = vector.shape_cast %122 : vector<256xf32> to vector<1x256xf32>
    %124 = vector.extract_strided_slice %112 {offsets = [1, 0], sizes = [7, 256], strides = [1, 1]} : vector<8x256xf32> to vector<7x256xf32>
    %125 = vector.extract_strided_slice %112 {offsets = [0, 0], sizes = [7, 256], strides = [1, 1]} : vector<8x256xf32> to vector<7x256xf32>
    %126 = arith.subf %124, %125 : vector<7x256xf32>
    %127 = math.absf %126 : vector<7x256xf32>
    %cst_66 = arith.constant dense<0.000000e+00> : vector<256xf32>
    %128 = vector.multi_reduction <add>, %127, %cst_66 [0] : vector<7x256xf32> to vector<256xf32>
    %129 = vector.shape_cast %128 : vector<256xf32> to vector<1x256xf32>
    %130 = arith.addf %107, %129 : vector<1x256xf32>
    %c16_i32_67 = arith.constant 16 : i32
    %131 = tpu.dynamic_rotate %112 by %c16_i32_67 dim 1 : vector<8x256xf32>, i32 -> vector<8x256xf32>
    %132 = arith.subf %131, %112 : vector<8x256xf32>
    %133 = math.absf %132 : vector<8x256xf32>
    %134 = arith.mulf %133, %106 : vector<8x256xf32>
    %cst_68 = arith.constant dense<0.000000e+00> : vector<256xf32>
    %135 = vector.multi_reduction <add>, %134, %cst_68 [0] : vector<8x256xf32> to vector<256xf32>
    %136 = vector.shape_cast %135 : vector<256xf32> to vector<1x256xf32>
    %137 = arith.addf %108, %136 : vector<1x256xf32>
    %c1_i32_69 = arith.constant 1 : i32
    %138 = tpu.dynamic_rotate %112 by %c1_i32_69 dim 1 : vector<8x256xf32>, i32 -> vector<8x256xf32>
    %139 = arith.subf %138, %112 : vector<8x256xf32>
    %140 = math.absf %139 : vector<8x256xf32>
    %141 = arith.mulf %140, %91 : vector<8x256xf32>
    %cst_70 = arith.constant dense<0.000000e+00> : vector<256xf32>
    %142 = vector.multi_reduction <add>, %141, %cst_70 [0] : vector<8x256xf32> to vector<256xf32>
    %143 = vector.shape_cast %142 : vector<256xf32> to vector<1x256xf32>
    %144 = arith.addf %109, %143 : vector<1x256xf32>
    %c1_71 = arith.constant 1 : index
    %c0_72 = arith.constant 0 : index
    %c0_73 = arith.constant 0 : index
    %145 = vector.load %arg7[%c1_71, %c0_72, %c0_73] : memref<4x8x256xf32, #tpu.memory_space<vmem>>, vector<1x8x256xf32>
    %146 = vector.shape_cast %145 : vector<1x8x256xf32> to vector<8x256xf32>
    %147 = arith.mulf %146, %71 : vector<8x256xf32>
    %c1_i32_74 = arith.constant 1 : i32
    %148 = vector.broadcast %c1_i32_74 : i32 to vector<8x256xi32>
    %149 = arith.cmpi eq, %1, %148 : vector<8x256xi32>
    %150 = arith.extui %149 : vector<8x256xi1> to vector<8x256xi32>
    %151 = arith.sitofp %150 : vector<8x256xi32> to vector<8x256xf32>
    %152 = arith.mulf %147, %151 : vector<8x256xf32>
    %cst_75 = arith.constant dense<0.000000e+00> : vector<256xf32>
    %153 = vector.multi_reduction <add>, %152, %cst_75 [0] : vector<8x256xf32> to vector<256xf32>
    %154 = vector.shape_cast %153 : vector<256xf32> to vector<1x256xf32>
    %cst_76 = arith.constant dense<0.000000e+00> : vector<256xf32>
    %155 = vector.multi_reduction <add>, %147, %cst_76 [0] : vector<8x256xf32> to vector<256xf32>
    %156 = vector.shape_cast %155 : vector<256xf32> to vector<1x256xf32>
    %cst_77 = arith.constant dense<0.000000e+00> : vector<256xf32>
    %157 = vector.multi_reduction <add>, %151, %cst_77 [0] : vector<8x256xf32> to vector<256xf32>
    %158 = vector.shape_cast %157 : vector<256xf32> to vector<1x256xf32>
    %159 = vector.extract_strided_slice %147 {offsets = [1, 0], sizes = [7, 256], strides = [1, 1]} : vector<8x256xf32> to vector<7x256xf32>
    %160 = vector.extract_strided_slice %147 {offsets = [0, 0], sizes = [7, 256], strides = [1, 1]} : vector<8x256xf32> to vector<7x256xf32>
    %161 = arith.subf %159, %160 : vector<7x256xf32>
    %162 = math.absf %161 : vector<7x256xf32>
    %cst_78 = arith.constant dense<0.000000e+00> : vector<256xf32>
    %163 = vector.multi_reduction <add>, %162, %cst_78 [0] : vector<7x256xf32> to vector<256xf32>
    %164 = vector.shape_cast %163 : vector<256xf32> to vector<1x256xf32>
    %165 = arith.addf %130, %164 : vector<1x256xf32>
    %c16_i32_79 = arith.constant 16 : i32
    %166 = tpu.dynamic_rotate %147 by %c16_i32_79 dim 1 : vector<8x256xf32>, i32 -> vector<8x256xf32>
    %167 = arith.subf %166, %147 : vector<8x256xf32>
    %168 = math.absf %167 : vector<8x256xf32>
    %169 = arith.mulf %168, %106 : vector<8x256xf32>
    %cst_80 = arith.constant dense<0.000000e+00> : vector<256xf32>
    %170 = vector.multi_reduction <add>, %169, %cst_80 [0] : vector<8x256xf32> to vector<256xf32>
    %171 = vector.shape_cast %170 : vector<256xf32> to vector<1x256xf32>
    %172 = arith.addf %137, %171 : vector<1x256xf32>
    %c1_i32_81 = arith.constant 1 : i32
    %173 = tpu.dynamic_rotate %147 by %c1_i32_81 dim 1 : vector<8x256xf32>, i32 -> vector<8x256xf32>
    %174 = arith.subf %173, %147 : vector<8x256xf32>
    %175 = math.absf %174 : vector<8x256xf32>
    %176 = arith.mulf %175, %91 : vector<8x256xf32>
    %cst_82 = arith.constant dense<0.000000e+00> : vector<256xf32>
    %177 = vector.multi_reduction <add>, %176, %cst_82 [0] : vector<8x256xf32> to vector<256xf32>
    %178 = vector.shape_cast %177 : vector<256xf32> to vector<1x256xf32>
    %179 = arith.addf %144, %178 : vector<1x256xf32>
    %c2_83 = arith.constant 2 : index
    %c0_84 = arith.constant 0 : index
    %c0_85 = arith.constant 0 : index
    %180 = vector.load %arg7[%c2_83, %c0_84, %c0_85] : memref<4x8x256xf32, #tpu.memory_space<vmem>>, vector<1x8x256xf32>
    %181 = vector.shape_cast %180 : vector<1x8x256xf32> to vector<8x256xf32>
    %182 = arith.mulf %181, %71 : vector<8x256xf32>
    %c2_i32_86 = arith.constant 2 : i32
    %183 = vector.broadcast %c2_i32_86 : i32 to vector<8x256xi32>
    %184 = arith.cmpi eq, %1, %183 : vector<8x256xi32>
    %185 = arith.extui %184 : vector<8x256xi1> to vector<8x256xi32>
    %186 = arith.sitofp %185 : vector<8x256xi32> to vector<8x256xf32>
    %187 = arith.mulf %182, %186 : vector<8x256xf32>
    %cst_87 = arith.constant dense<0.000000e+00> : vector<256xf32>
    %188 = vector.multi_reduction <add>, %187, %cst_87 [0] : vector<8x256xf32> to vector<256xf32>
    %189 = vector.shape_cast %188 : vector<256xf32> to vector<1x256xf32>
    %cst_88 = arith.constant dense<0.000000e+00> : vector<256xf32>
    %190 = vector.multi_reduction <add>, %182, %cst_88 [0] : vector<8x256xf32> to vector<256xf32>
    %191 = vector.shape_cast %190 : vector<256xf32> to vector<1x256xf32>
    %cst_89 = arith.constant dense<0.000000e+00> : vector<256xf32>
    %192 = vector.multi_reduction <add>, %186, %cst_89 [0] : vector<8x256xf32> to vector<256xf32>
    %193 = vector.shape_cast %192 : vector<256xf32> to vector<1x256xf32>
    %194 = vector.extract_strided_slice %182 {offsets = [1, 0], sizes = [7, 256], strides = [1, 1]} : vector<8x256xf32> to vector<7x256xf32>
    %195 = vector.extract_strided_slice %182 {offsets = [0, 0], sizes = [7, 256], strides = [1, 1]} : vector<8x256xf32> to vector<7x256xf32>
    %196 = arith.subf %194, %195 : vector<7x256xf32>
    %197 = math.absf %196 : vector<7x256xf32>
    %cst_90 = arith.constant dense<0.000000e+00> : vector<256xf32>
    %198 = vector.multi_reduction <add>, %197, %cst_90 [0] : vector<7x256xf32> to vector<256xf32>
    %199 = vector.shape_cast %198 : vector<256xf32> to vector<1x256xf32>
    %200 = arith.addf %165, %199 : vector<1x256xf32>
    %c16_i32_91 = arith.constant 16 : i32
    %201 = tpu.dynamic_rotate %182 by %c16_i32_91 dim 1 : vector<8x256xf32>, i32 -> vector<8x256xf32>
    %202 = arith.subf %201, %182 : vector<8x256xf32>
    %203 = math.absf %202 : vector<8x256xf32>
    %204 = arith.mulf %203, %106 : vector<8x256xf32>
    %cst_92 = arith.constant dense<0.000000e+00> : vector<256xf32>
    %205 = vector.multi_reduction <add>, %204, %cst_92 [0] : vector<8x256xf32> to vector<256xf32>
    %206 = vector.shape_cast %205 : vector<256xf32> to vector<1x256xf32>
    %207 = arith.addf %172, %206 : vector<1x256xf32>
    %c1_i32_93 = arith.constant 1 : i32
    %208 = tpu.dynamic_rotate %182 by %c1_i32_93 dim 1 : vector<8x256xf32>, i32 -> vector<8x256xf32>
    %209 = arith.subf %208, %182 : vector<8x256xf32>
    %210 = math.absf %209 : vector<8x256xf32>
    %211 = arith.mulf %210, %91 : vector<8x256xf32>
    %cst_94 = arith.constant dense<0.000000e+00> : vector<256xf32>
    %212 = vector.multi_reduction <add>, %211, %cst_94 [0] : vector<8x256xf32> to vector<256xf32>
    %213 = vector.shape_cast %212 : vector<256xf32> to vector<1x256xf32>
    %214 = arith.addf %179, %213 : vector<1x256xf32>
    %c3_95 = arith.constant 3 : index
    %c0_96 = arith.constant 0 : index
    %c0_97 = arith.constant 0 : index
    %215 = vector.load %arg7[%c3_95, %c0_96, %c0_97] : memref<4x8x256xf32, #tpu.memory_space<vmem>>, vector<1x8x256xf32>
    %216 = vector.shape_cast %215 : vector<1x8x256xf32> to vector<8x256xf32>
    %217 = arith.mulf %216, %71 : vector<8x256xf32>
    %c3_i32_98 = arith.constant 3 : i32
    %218 = vector.broadcast %c3_i32_98 : i32 to vector<8x256xi32>
    %219 = arith.cmpi eq, %1, %218 : vector<8x256xi32>
    %220 = arith.extui %219 : vector<8x256xi1> to vector<8x256xi32>
    %221 = arith.sitofp %220 : vector<8x256xi32> to vector<8x256xf32>
    %222 = arith.mulf %217, %221 : vector<8x256xf32>
    %cst_99 = arith.constant dense<0.000000e+00> : vector<256xf32>
    %223 = vector.multi_reduction <add>, %222, %cst_99 [0] : vector<8x256xf32> to vector<256xf32>
    %224 = vector.shape_cast %223 : vector<256xf32> to vector<1x256xf32>
    %cst_100 = arith.constant dense<0.000000e+00> : vector<256xf32>
    %225 = vector.multi_reduction <add>, %217, %cst_100 [0] : vector<8x256xf32> to vector<256xf32>
    %226 = vector.shape_cast %225 : vector<256xf32> to vector<1x256xf32>
    %cst_101 = arith.constant dense<0.000000e+00> : vector<256xf32>
    %227 = vector.multi_reduction <add>, %221, %cst_101 [0] : vector<8x256xf32> to vector<256xf32>
    %228 = vector.shape_cast %227 : vector<256xf32> to vector<1x256xf32>
    %229 = vector.extract_strided_slice %217 {offsets = [1, 0], sizes = [7, 256], strides = [1, 1]} : vector<8x256xf32> to vector<7x256xf32>
    %230 = vector.extract_strided_slice %217 {offsets = [0, 0], sizes = [7, 256], strides = [1, 1]} : vector<8x256xf32> to vector<7x256xf32>
    %231 = arith.subf %229, %230 : vector<7x256xf32>
    %232 = math.absf %231 : vector<7x256xf32>
    %cst_102 = arith.constant dense<0.000000e+00> : vector<256xf32>
    %233 = vector.multi_reduction <add>, %232, %cst_102 [0] : vector<7x256xf32> to vector<256xf32>
    %234 = vector.shape_cast %233 : vector<256xf32> to vector<1x256xf32>
    %235 = arith.addf %200, %234 : vector<1x256xf32>
    %c16_i32_103 = arith.constant 16 : i32
    %236 = tpu.dynamic_rotate %217 by %c16_i32_103 dim 1 : vector<8x256xf32>, i32 -> vector<8x256xf32>
    %237 = arith.subf %236, %217 : vector<8x256xf32>
    %238 = math.absf %237 : vector<8x256xf32>
    %239 = arith.mulf %238, %106 : vector<8x256xf32>
    %cst_104 = arith.constant dense<0.000000e+00> : vector<256xf32>
    %240 = vector.multi_reduction <add>, %239, %cst_104 [0] : vector<8x256xf32> to vector<256xf32>
    %241 = vector.shape_cast %240 : vector<256xf32> to vector<1x256xf32>
    %242 = arith.addf %207, %241 : vector<1x256xf32>
    %c1_i32_105 = arith.constant 1 : i32
    %243 = tpu.dynamic_rotate %217 by %c1_i32_105 dim 1 : vector<8x256xf32>, i32 -> vector<8x256xf32>
    %244 = arith.subf %243, %217 : vector<8x256xf32>
    %245 = math.absf %244 : vector<8x256xf32>
    %246 = arith.mulf %245, %91 : vector<8x256xf32>
    %cst_106 = arith.constant dense<0.000000e+00> : vector<256xf32>
    %247 = vector.multi_reduction <add>, %246, %cst_106 [0] : vector<8x256xf32> to vector<256xf32>
    %248 = vector.shape_cast %247 : vector<256xf32> to vector<1x256xf32>
    %249 = arith.addf %214, %248 : vector<1x256xf32>
    %250 = arith.subf %73, %66 : vector<8x256xf32>
    %cst_107 = arith.constant dense<0.000000e+00> : vector<256xf32>
    %251 = vector.multi_reduction <add>, %250, %cst_107 [0] : vector<8x256xf32> to vector<256xf32>
    %252 = vector.shape_cast %251 : vector<256xf32> to vector<1x256xf32>
    %253 = tpu.concatenate %119, %154, %189, %224, %121, %156, %191, %226, %123, %158, %193, %228, %252, %235, %242, %249 in 0 : vector<1x256xf32>, vector<1x256xf32>, vector<1x256xf32>, vector<1x256xf32>, vector<1x256xf32>, vector<1x256xf32>, vector<1x256xf32>, vector<1x256xf32>, vector<1x256xf32>, vector<1x256xf32>, vector<1x256xf32>, vector<1x256xf32>, vector<1x256xf32>, vector<1x256xf32>, vector<1x256xf32>, vector<1x256xf32> -> vector<16x256xf32>
    %c0_108 = arith.constant 0 : index
    %c0_109 = arith.constant 0 : index
    %c0_110 = arith.constant 0 : index
    %254 = vector.load %arg5[%c0_108, %c0_109, %c0_110] : memref<1x16x256xf32, #tpu.memory_space<vmem>>, vector<1x16x256xf32>
    %255 = vector.shape_cast %254 : vector<1x16x256xf32> to vector<16x256xf32>
    %256 = vector.shape_cast %253 : vector<16x256xf32> to vector<1x16x256xf32>
    tpu.vector_store %arg5[%c0_108, %c0_109, %c0_110], %256 {strides = array<i32>} : memref<1x16x256xf32, #tpu.memory_space<vmem>>, vector<1x16x256xf32>,
    return
  }
  func.func @transform_0(%arg0: i32, %arg1: i32) -> (i32, i32, i32, i32) {
    %c0_i32 = arith.constant 0 : i32
    %c0_i32_0 = arith.constant 0 : i32
    %c0_i32_1 = arith.constant 0 : i32
    return %arg0, %c0_i32, %arg1, %c0_i32_0 : i32, i32, i32, i32
  }
  func.func @transform_1(%arg0: i32, %arg1: i32) -> (i32, i32, i32) {
    %c0_i32 = arith.constant 0 : i32
    %c0_i32_0 = arith.constant 0 : i32
    return %arg0, %arg1, %c0_i32 : i32, i32, i32
  }
  func.func @transform_2(%arg0: i32, %arg1: i32) -> (i32, i32) {
    %c0_i32 = arith.constant 0 : i32
    %c0_i32_0 = arith.constant 0 : i32
    %c0_i32_1 = arith.constant 0 : i32
    return %c0_i32, %c0_i32_0 : i32, i32
  }
  func.func @transform_3(%arg0: i32, %arg1: i32) -> (i32, i32, i32) {
    %c0_i32 = arith.constant 0 : i32
    %c0_i32_0 = arith.constant 0 : i32
    %c0_i32_1 = arith.constant 0 : i32
    return %arg0, %c0_i32, %c0_i32_0 : i32, i32, i32
  }
}

</mosaic_0001>

<llo_original>
// kernel: tpu_custom_call.1
$region0: #{tpu_custom_call.1}
  #allocation0 [shape = 'u32[]', space=smem, size = 0x4, offset = 0x4, fixed_abs, tag = 'smem constant byte address 0x4 - core index']
  #allocation1 [shape = 'u32[72,128]{1,0:T(1,128)}', space=vmem, size = 0x9000, scoped, tag = 'internal scratch']
  #allocation2 [shape = 'f32[4,256]{1,0:T(4,128)}', space=vmem, size = 0x1000, scoped, tag = 'scratch operand']
  #allocation3 [shape = 'f32[4,8,256]{2,1,0:T(8,128)}', space=vmem, size = 0x8000, scoped, tag = 'scratch operand']
  %s0 = inlined_call_operand.hbm [shape: f32[2,4,8,256], index: 0, kind: input, shape index: {}]
  %s1 = inlined_call_operand.hbm [shape: s32[2,8,256], index: 1, kind: input, shape index: {}]
  %s2 = inlined_call_operand.hbm [shape: s32[2,256], index: 2, kind: input, shape index: {}]
  %s3 = inlined_call_operand.hbm [shape: f32[2,16,256], index: 3, kind: output, shape index: {}]
  %s4 = sld [smem:[#allocation0]]
  $region57: #{tpu_custom_call.1} parent=0
    _
  %s6 = ssub.s32 1, %s4
  %s7 = scalar_select 0, %s6, %s4
  $region1: #{tpu_custom_call.1} parent=0
    #allocation4 [shape = 'u8[65536]{0}', space=vmem, size = 0x10000, scoped, tag = 'input window, operand 0']
    #allocation5 [shape = 's32[2]{0}', space=sflag, size = 0x8, scoped, tag = 'scoped memory for tpu_custom_call.1']
    #allocation6 [shape = 's32[2]{0}', space=sflag, size = 0x8, scoped, tag = 'scoped memory for tpu_custom_call.1']
    #allocation7 [shape = 'u8[16384]{0}', space=vmem, size = 0x4000, scoped, tag = 'input window, operand 1']
    #allocation8 [shape = 's32[2]{0}', space=sflag, size = 0x8, scoped, tag = 'scoped memory for tpu_custom_call.1']
    #allocation9 [shape = 'u8[2048]{0}', space=vmem, size = 0x800, scoped, tag = 'input window, operand 2, single buffered']
    #allocation10 [shape = 'u8[32768]{0}', space=vmem, size = 0x8000, scoped, tag = 'output window, operand 0']
    %8 = vsyncpa [#allocation5], 0
    %s9 = scalar_lea.sflag [#allocation5], 1
    %10 = vsyncpa %s9, 0
    %11 = vsyncpa [#allocation8], 0
    %s12 = scalar_lea.sflag [#allocation8], 1
    %13 = vsyncpa %s12, 0
    %14 = vsyncpa [#allocation6], 0
    %s15 = scalar_lea.sflag [#allocation6], 1
    %16 = vsyncpa %s15, 0
    loop: start=0, step=1, limit=4
    $region2: #{tpu_custom_call.1} parent=1 // loop_pre_header
      _
    $region3: #{tpu_custom_call.1} parent=1 // loop_header
      %s18 = sphi 0, %s22
      %p19 = scmp.ge.s32.totalorder %s18, 4
      %s25 = sphi 0, %s37
      %s26 = sphi 0, %s33
      %s27 = sphi 0, %s25
      %s28 = sphi 0, %s26
      %s29 = sphi 0, %s27
      %s30 = sphi 0, %s28
      %s42 = sphi 0, %s44
      %s45 = sphi 0, %s42
      %s46 = sphi 0, %s45
      %s62 = sphi 0, %s46
      %s70 = sphi 0, %s72
      %s73 = sphi 0, %s70
      %s74 = sphi 0, %s73
      %s90 = sphi 0, %s74
      %s94 = sphi 0, %s94
      %s96 = sphi 0, %s94
      %s97 = sphi 0, %s96
      %s111 = sphi 0, %s97
      %s117 = sphi 0, %s119
      %s120 = sphi 0, %s117
      %s121 = sphi 0, %s120
      %s137 = sphi 0, %s121
    $region4: #{tpu_custom_call.1} parent=1 // loop_header_branch
      %21 = sbr.rel (%p19) target = $region8
    $region5: #{tpu_custom_call.1} parent=1 // loop_body
      %s23 = ssub.s32 %s18, 1
      %s24 = ssub.s32 %s18, 2
      %s31 = sadd.s32 1, %s26
      %p32 = scmp.ge.s32.totalorder %s31, 1
      %s33 = scalar_select %p32, 0, %s31
      %s34 = sadd.s32 1, %s25
      %s35 = scalar_select %p32, %s34, %s25
      %p36 = scmp.ge.s32.totalorder %s35, 2
      %s37 = scalar_select %p36, 0, %s35
      %s38 = ssub.s32 %s25, %s37
      %s39 = ssub.s32 %s26, %s33
      %s40 = sor.u32 %s38, %s39
      %p41 = scmp.eq.s32.totalorder %s40, 0
      %s43 = sadd.s32 %s42, 1
      %s44 = scalar_select %p41, %s42, %s43
      %p47 = pneg %p41
      %p48 = scmp.eq.s32.totalorder %s18, 1
      %p49 = por %p47, %p48
      %p50 = scmp.ne.s32.totalorder %s42, %s45
      %p51 = scmp.eq.s32.totalorder %s18, 0
      %p52 = por %p50, %p51
      %p53 = scmp.ne.s32.totalorder %s42, %s45
      %p54 = scmp.eq.s32.totalorder %s23, 1
      %p55 = por %p53, %p54
      %p56 = scmp.ne.s32.totalorder %s45, %s46
      %p57 = scmp.eq.s32.totalorder %s23, 0
      %p58 = por %p56, %p57
      %p59 = scmp.ne.s32.totalorder %s45, %s46
      %p60 = scmp.eq.s32.totalorder %s24, 1
      %p61 = por %p59, %p60
      %p63 = scmp.ne.s32.totalorder %s46, %s62
      %p64 = scmp.eq.s32.totalorder %s24, 0
      %p65 = por %p63, %p64
      %s66 = ssub.s32 %s25, %s37
      %s67 = ssub.s32 %s26, %s33
      %s68 = sor.u32 %s66, %s67
      %p69 = scmp.eq.s32.totalorder %s68, 0
      %s71 = sadd.s32 %s70, 1
      %s72 = scalar_select %p69, %s70, %s71
      %p75 = pneg %p69
      %p76 = scmp.eq.s32.totalorder %s18, 1
      %p77 = por %p75, %p76
      %p78 = scmp.ne.s32.totalorder %s70, %s73
      %p79 = scmp.eq.s32.totalorder %s18, 0
      %p80 = por %p78, %p79
      %p81 = scmp.ne.s32.totalorder %s70, %s73
      %p82 = scmp.eq.s32.totalorder %s23, 1
      %p83 = por %p81, %p82
      %p84 = scmp.ne.s32.totalorder %s73, %s74
      %p85 = scmp.eq.s32.totalorder %s23, 0
      %p86 = por %p84, %p85
      %p87 = scmp.ne.s32.totalorder %s73, %s74
      %p88 = scmp.eq.s32.totalorder %s24, 1
      %p89 = por %p87, %p88
      %p91 = scmp.ne.s32.totalorder %s74, %s90
      %p92 = scmp.eq.s32.totalorder %s24, 0
      %p93 = por %p91, %p92
      %s95 = sadd.s32 %s94, 1
      %p98 = scmp.eq.s32.totalorder %s18, 1
      %p99 = scmp.ne.s32.totalorder %s94, %s96
      %p100 = scmp.eq.s32.totalorder %s18, 0
      %p101 = por %p99, %p100
      %p102 = scmp.ne.s32.totalorder %s94, %s96
      %p103 = scmp.eq.s32.totalorder %s23, 1
      %p104 = por %p102, %p103
      %p105 = scmp.ne.s32.totalorder %s96, %s97
      %p106 = scmp.eq.s32.totalorder %s23, 0
      %p107 = por %p105, %p106
      %p108 = scmp.ne.s32.totalorder %s96, %s97
      %p109 = scmp.eq.s32.totalorder %s24, 1
      %p110 = por %p108, %p109
      %p112 = scmp.ne.s32.totalorder %s97, %s111
      %p113 = scmp.eq.s32.totalorder %s24, 0
      %p114 = por %p112, %p113
      %s115 = ssub.s32 %s25, %s37
      %p116 = scmp.eq.s32.totalorder %s115, 0
      %s118 = sadd.s32 %s117, 1
      %s119 = scalar_select %p116, %s117, %s118
      %p122 = pneg %p116
      %p123 = scmp.eq.s32.totalorder %s18, 1
      %p124 = por %p122, %p123
      %p125 = scmp.ne.s32.totalorder %s117, %s120
      %p126 = scmp.eq.s32.totalorder %s18, 0
      %p127 = por %p125, %p126
      %p128 = scmp.ne.s32.totalorder %s117, %s120
      %p129 = scmp.eq.s32.totalorder %s23, 1
      %p130 = por %p128, %p129
      %p131 = scmp.ne.s32.totalorder %s120, %s121
      %p132 = scmp.eq.s32.totalorder %s23, 0
      %p133 = por %p131, %p132
      %p134 = scmp.ne.s32.totalorder %s120, %s121
      %p135 = scmp.eq.s32.totalorder %s24, 1
      %p136 = por %p134, %p135
      %p138 = scmp.ne.s32.totalorder %s121, %s137
      %p139 = scmp.eq.s32.totalorder %s24, 0
      %p140 = por %p138, %p139
      %p141 = scmp.le.s32.totalorder 1, %s18
      %p142 = scmp.lt.s32.totalorder %s18, 3
      %p143 = pnand %p141, %p142
      %p144 = pneg %p143
      // Predicated region
      $region9: #{tpu_custom_call.1} parent=5 // pred_check
        _
      $region10: #{tpu_custom_call.1} parent=5 // pred_check_branch
        %146 = sbr.rel (%p143) target = $region12
      $region11: #{tpu_custom_call.1} parent=5 // pred_region
        %s147 = ssub.s32 %s18, 1
        // Predicated region
        $region13: #{tpu_custom_call.1} parent=11 // pred_check
          %p148 = pneg %p107
        $region14: #{tpu_custom_call.1} parent=11 // pred_check_branch
          %150 = sbr.rel (%p148) target = $region16
        $region15: #{tpu_custom_call.1} parent=11 // pred_region
          %152 = vsyncadd [#allocation8], 0
          %s154 = sshll.u32 %s2, 4
          %s155 = int_to_ptr.hbm [resolvable:$true] %s154
          %s156 = sshll.u32 [#allocation9], 4
          %s157 = int_to_ptr.vmem [resolvable:$true] %s156
          %159 = dma.hbm_to_vmem [thread:$0]  %s155, 64, %s157, [#allocation8]
        $region16: #{tpu_custom_call.1} parent=11 // pred_fallthru
          _
      $region12: #{tpu_custom_call.1} parent=5 // pred_fallthru
        _
      %p160 = scmp.lt.s32.totalorder %s18, 2
      // Predicated region
      $region17: #{tpu_custom_call.1} parent=5 // pred_check
        %p161 = pneg %p160
      $region18: #{tpu_custom_call.1} parent=5 // pred_check_branch
        %163 = sbr.rel (%p161) target = $region20
      $region19: #{tpu_custom_call.1} parent=5 // pred_region
        // Predicated region
        $region21: #{tpu_custom_call.1} parent=19 // pred_check
          %p164 = pneg %p52
        $region22: #{tpu_custom_call.1} parent=19 // pred_check_branch
          %166 = sbr.rel (%p164) target = $region24
        $region23: #{tpu_custom_call.1} parent=19 // pred_region
          %s167 = sand.u32 %s42, 1
          %s168 = scalar_lea.sflag [#allocation5], %s167
          %s169 = sand.u32 %s42, 1
          %s170 = smul.addr %s169, 64
          %s171 = scalar_lea.vmem [#allocation4], %s170
          %173 = vsyncadd %s168, 0
          %s174 = smul.addr %s26, 2
          %s175 = smul.addr %s25, 8
          %s176 = sadd.s32 %s174, %s175
          %s177 = smul.addr %s176, 8
          %s178 = scalar_lea.hbm %s0, %s177
          %s179 = sshll.u32 %s178, 4
          %s180 = int_to_ptr.hbm [resolvable:$true] %s179
          %s181 = sshll.u32 %s171, 4
          %s182 = int_to_ptr.vmem [resolvable:$true] %s181
          %187 = dma.hbm_to_vmem [thread:$0]  %s180, 1024, %s182, %s168, 256, 256, 16
        $region24: #{tpu_custom_call.1} parent=19 // pred_fallthru
          _
        // Predicated region
        $region25: #{tpu_custom_call.1} parent=19 // pred_check
          %p188 = pneg %p80
        $region26: #{tpu_custom_call.1} parent=19 // pred_check_branch
          %190 = sbr.rel (%p188) target = $region28
        $region27: #{tpu_custom_call.1} parent=19 // pred_region
          %s191 = sand.u32 %s18, 1
          %s192 = scalar_lea.sflag [#allocation8], %s191
          %s193 = sand.u32 %s70, 1
          %s194 = smul.addr %s193, 16
          %s195 = scalar_lea.vmem [#allocation7], %s194
          %197 = vsyncadd %s192, 0
          %s198 = smul.addr %s26, 2
          %s199 = smul.addr %s25, 2
          %s200 = sadd.s32 %s198, %s199
          %s201 = smul.addr %s200, 8
          %s202 = scalar_lea.hbm %s1, %s201
          %s204 = sshll.u32 %s202, 4
          %s205 = int_to_ptr.hbm [resolvable:$true] %s204
          %s206 = sshll.u32 %s195, 4
          %s207 = int_to_ptr.vmem [resolvable:$true] %s206
          %209 = dma.hbm_to_vmem [thread:$0]  %s205, 256, %s207, %s192
        $region28: #{tpu_custom_call.1} parent=19 // pred_fallthru
          _
      $region20: #{tpu_custom_call.1} parent=5 // pred_fallthru
        _
      %p210 = scmp.le.s32.totalorder 1, %s18
      %p211 = scmp.lt.s32.totalorder %s18, 3
      %p212 = pnand %p210, %p211
      %p213 = pneg %p212
      // Predicated region
      $region29: #{tpu_custom_call.1} parent=5 // pred_check
        _
      $region30: #{tpu_custom_call.1} parent=5 // pred_check_branch
        %215 = sbr.rel (%p212) target = $region32
      $region31: #{tpu_custom_call.1} parent=5 // pred_region
        %s216 = ssub.s32 %s18, 1
        %s217 = sand.u32 %s45, 1
        %s218 = scalar_lea.sflag [#allocation5], %s217
        %s219 = sand.u32 %s45, 1
        %s220 = smul.addr %s219, 64
        %s221 = scalar_lea.vmem [#allocation4], %s220
        // Predicated region
        $region33: #{tpu_custom_call.1} parent=31 // pred_check
          %p222 = pneg %p58
        $region34: #{tpu_custom_call.1} parent=31 // pred_check_branch
          %224 = sbr.rel (%p222) target = $region36
        $region35: #{tpu_custom_call.1} parent=31 // pred_region
          %226 = dma.done %s218, 1024
        $region36: #{tpu_custom_call.1} parent=31 // pred_fallthru
          _
        %s227 = sand.u32 %s23, 1
        %s228 = scalar_lea.sflag [#allocation8], %s227
        %s229 = sand.u32 %s73, 1
        %s230 = smul.addr %s229, 16
        %s231 = scalar_lea.vmem [#allocation7], %s230
        // Predicated region
        $region37: #{tpu_custom_call.1} parent=31 // pred_check
          %p232 = pneg %p86
        $region38: #{tpu_custom_call.1} parent=31 // pred_check_branch
          %234 = sbr.rel (%p232) target = $region40
        $region39: #{tpu_custom_call.1} parent=31 // pred_region
          %236 = dma.done %s228, 256
        $region40: #{tpu_custom_call.1} parent=31 // pred_fallthru
          _
        // Predicated region
        $region41: #{tpu_custom_call.1} parent=31 // pred_check
          %p237 = pneg %p107
        $region42: #{tpu_custom_call.1} parent=31 // pred_check_branch
          %239 = sbr.rel (%p237) target = $region44
        $region43: #{tpu_custom_call.1} parent=31 // pred_region
          %241 = dma.done [#allocation8], 64
        $region44: #{tpu_custom_call.1} parent=31 // pred_fallthru
          _
        %s242 = sand.u32 %s45, 1
        %s243 = scalar_lea.sflag [#allocation5], %s242
        %s244 = sand.u32 %s45, 1
        %s245 = smul.addr %s244, 64
        %s246 = scalar_lea.vmem [#allocation4], %s245
        %p247 = pneg %p58
        %p248 = pneg %p55
        %s249 = sand.u32 %s23, 1
        %s250 = scalar_lea.sflag [#allocation8], %s249
        %s251 = sand.u32 %s73, 1
        %s252 = smul.addr %s251, 16
        %s253 = scalar_lea.vmem [#allocation7], %s252
        %p254 = pneg %p86
        %p255 = pneg %p83
        %p256 = pneg %p107
        %p257 = pneg %p104
        %p258 = pneg %p133
        %p259 = pneg %p130
        %s260 = sand.u32 %s120, 1
        %s261 = scalar_lea.sflag [#allocation6], %s260
        %s262 = sand.u32 %s120, 1
        %s263 = smul.addr %s262, 32
        %s264 = scalar_lea.vmem [#allocation10], %s263
        %v265 = vld [vmem:[%s231] sm:$0xff]
        %v266 = vld [vmem:[%s231 + $0x8] sm:$0xff]
        %v267 = vld [vmem:[%s221] sm:$0xff]
        %v268 = vld [vmem:[%s221 + $0x8] sm:$0xff]
        %s269 = scalar_lea.vmem %s221, 16 [#allocation4]
        %v270 = vld [vmem:[%s269] sm:$0xff]
        %v271 = vld [vmem:[%s269 + $0x8] sm:$0xff]
        %v272 = vmax.f32 %v267, %v270
        %v273 = vmax.f32 %v268, %v271
        %s274 = scalar_lea.vmem %s221, 32 [#allocation4]
        %v275 = vld [vmem:[%s274] sm:$0xff]
        %v276 = vld [vmem:[%s274 + $0x8] sm:$0xff]
        %v277 = vmax.f32 %v272, %v275
        %v278 = vmax.f32 %v273, %v276
        %s279 = scalar_lea.vmem %s221, 48 [#allocation4]
        %v280 = vld [vmem:[%s279] sm:$0xff]
        %v281 = vld [vmem:[%s279 + $0x8] sm:$0xff]
        %v282 = vmax.f32 %v277, %v280
        %v283 = vmax.f32 %v278, %v281
        %v284 = vsub.f32 %v267, %v282
        %v285 = vsub.f32 %v268, %v283
        %v286 = vmul.f32 %v284, 1.442695
        %v287 = vpow.pop %v286
        %v288 = vmul.f32 %v285, 1.442695
        %v289 = vpow.pop %v288
        %290 = vst [vmem:[#allocation3] sm:$0xff] %v287
        %291 = vst [vmem:[#allocation3 + $0x8] sm:$0xff] %v289
        %v292 = vadd.f32 %v287, 0.0
        %v293 = vadd.f32 %v289, 0.0
        %vm294 = vcmp.eq.s32.totalorder %v265, 0
        %vm295 = vcmp.eq.s32.totalorder %v266, 0
        %v296 = vsel %vm294, %v267, 0.0
        %v297 = vsel %vm295, %v268, 0.0
        %v298 = vadd.f32 %v296, 0.0
        %v299 = vadd.f32 %v297, 0.0
        %v300 = vld [vmem:[%s269] sm:$0xff]
        %v301 = vld [vmem:[%s269 + $0x8] sm:$0xff]
        %v302 = vsub.f32 %v300, %v282
        %v303 = vsub.f32 %v301, %v283
        %v304 = vmul.f32 %v302, 1.442695
        %v305 = vpow.pop %v304
        %v306 = vmul.f32 %v303, 1.442695
        %v307 = vpow.pop %v306
        %s308 = scalar_lea.vmem [#allocation3], 16
        %309 = vst [vmem:[%s308] sm:$0xff] %v305
        %310 = vst [vmem:[%s308 + $0x8] sm:$0xff] %v307
        %v311 = vadd.f32 %v292, %v305
        %v312 = vadd.f32 %v293, %v307
        %vm313 = vcmp.eq.s32.totalorder %v265, 1
        %vm314 = vcmp.eq.s32.totalorder %v266, 1
        %v315 = vsel %vm313, %v300, 0.0
        %v316 = vsel %vm314, %v301, 0.0
        %v317 = vadd.f32 %v298, %v315
        %v318 = vadd.f32 %v299, %v316
        %v319 = vld [vmem:[%s274] sm:$0xff]
        %v320 = vld [vmem:[%s274 + $0x8] sm:$0xff]
        %v321 = vsub.f32 %v319, %v282
        %v322 = vsub.f32 %v320, %v283
        %v323 = vmul.f32 %v321, 1.442695
        %v324 = vpow.pop %v323
        %v325 = vmul.f32 %v322, 1.442695
        %v326 = vpow.pop %v325
        %s327 = scalar_lea.vmem [#allocation3], 32
        %328 = vst [vmem:[%s327] sm:$0xff] %v324
        %329 = vst [vmem:[%s327 + $0x8] sm:$0xff] %v326
        %v330 = vadd.f32 %v311, %v324
        %v331 = vadd.f32 %v312, %v326
        %vm332 = vcmp.eq.s32.totalorder %v265, 2
        %vm333 = vcmp.eq.s32.totalorder %v266, 2
        %v334 = vsel %vm332, %v319, 0.0
        %v335 = vsel %vm333, %v320, 0.0
        %v336 = vadd.f32 %v317, %v334
        %v337 = vadd.f32 %v318, %v335
        %v338 = vld [vmem:[%s279] sm:$0xff]
        %v339 = vld [vmem:[%s279 + $0x8] sm:$0xff]
        %v340 = vsub.f32 %v338, %v282
        %v341 = vsub.f32 %v339, %v283
        %v342 = vmul.f32 %v340, 1.442695
        %v343 = vpow.pop %v342
        %v344 = vmul.f32 %v341, 1.442695
        %v345 = vpow.pop %v344
        %s346 = scalar_lea.vmem [#allocation3], 48
        %347 = vst [vmem:[%s346] sm:$0xff] %v343
        %348 = vst [vmem:[%s346 + $0x8] sm:$0xff] %v345
        %v349 = vadd.f32 %v330, %v343
        %v350 = vadd.f32 %v331, %v345
        %vm351 = vcmp.eq.s32.totalorder %v265, 3
        %vm352 = vcmp.eq.s32.totalorder %v266, 3
        %v353 = vsel %vm351, %v338, 0.0
        %v354 = vsel %vm352, %v339, 0.0
        %v355 = vadd.f32 %v336, %v353
        %v356 = vadd.f32 %v337, %v354
        %v357 = vrcp.pop %v349
        %v358 = vrcp.pop %v350
        %v359 = vmul.f32 %v349, %v357
        %v360 = vmul.f32 %v350, %v358
        %v361 = vsub.f32 2.0, %v359
        %v362 = vsub.f32 2.0, %v360
        %v363 = vmul.f32 %v357, %v361
        %v364 = vmul.f32 %v358, %v362
        %v365 = vlog2.pop %v349
        %v366 = vmul.f32 %v365, 0.6931472
        %v367 = vlog2.pop %v350
        %v368 = vmul.f32 %v367, 0.6931472
        %v369 = vadd.f32 %v282, %v366
        %v370 = vadd.f32 %v283, %v368
        %v371 = vld [vmem:[#allocation9] sm:$0xf]
        %372 = vst [vmem:[#allocation1] ss:$4 sm:$0xff] %v371
        %v373 = vld.sshfl [vmem:[#allocation1] sm:$0xff pattern:$0x73625140]
        %v374 = vld.sshfl [vmem:[#allocation1 + $0x8] sm:$0xff pattern:$0x73625140]
        %375 = vrot.lane.b32.xlu0 %v373, 1
        %v376 = vpop.permute.xlu0 %375
        %377 = vrot.lane.b32.xlu0 %v374, 1
        %v378 = vpop.permute.xlu0 %377
        %v379 = vlaneseq
        %v380 = vand.u32 %v379, 127
        %vm381 = vcmp.lt.s32.totalorder %v380, 1
        %v382 = vsel %vm381, %v376, %v378
        %v383 = vsel %vm381, %v378, %v376
        %v384 = vperm.slane %v371, 1
        %v385 = vperm.slane %v371, 3
        %vm386 = vcmp.eq.s32.totalorder %v383, %v384
        %vm387 = vcmp.eq.s32.totalorder %v382, %v385
        %v388 = vperm.slane %v371, 0
        %v389 = vperm.slane %v371, 2
        %v390 = vsub.s32 %v383, %v388
        %v391 = vsub.s32 %v382, %v389
        %vm392 = vcmp.lt.s32.totalorder %v390, 0
        %v393 = vsub.s32 0, %v390
        %v394 = vsel %vm392, %v393, %v390
        %vm395 = vcmp.lt.s32.totalorder %v391, 0
        %v396 = vsub.s32 0, %v391
        %v397 = vsel %vm395, %v396, %v391
        %vm398 = vcmp.eq.s32.totalorder %v394, 1
        %vm399 = vcmp.eq.s32.totalorder %v397, 1
        %v400 = vsel %vm398, 1, 0
        %v401 = vsel %vm399, 1, 0
        %v402 = vrot.slane %v400, 7
        %v403 = vrot.slane %v401, 7
        %vm404 = vcmp.ne.s32.totalorder %v402, 0
        %vm405 = vcmp.ne.s32.totalorder %v403, 0
        %vm406 = vmand %vm386, %vm404
        %vm407 = vmand %vm387, %vm405
        %v408 = vsel %vm406, 1, 0
        %v409 = vsel %vm407, 1, 0
        %v410 = vcvt.s32.f32 %v408
        %v411 = vcvt.s32.f32 %v409
        %v412 = vperm.slane %v410, 1
        %v413 = vperm.slane %v411, 1
        %414 = vst [vmem:[#allocation1] ss:$4 sm:$0xff] %v371
        %v415 = vld.sshfl [vmem:[#allocation1] sm:$0xff pattern:$0x73625140]
        %v416 = vld.sshfl [vmem:[#allocation1 + $0x8] sm:$0xff pattern:$0x73625140]
        %417 = vrot.lane.b32.xlu0 %v415, 16
        %v418 = vpop.permute.xlu0 %417
        %419 = vrot.lane.b32.xlu0 %v416, 16
        %v420 = vpop.permute.xlu0 %419
        %vm421 = vcmp.lt.s32.totalorder %v380, 16
        %v422 = vsel %vm421, %v418, %v420
        %v423 = vsel %vm421, %v420, %v418
        %vm424 = vcmp.eq.s32.totalorder %v423, %v388
        %vm425 = vcmp.eq.s32.totalorder %v422, %v389
        %v426 = vsub.s32 %v423, %v384
        %v427 = vsub.s32 %v422, %v385
        %vm428 = vcmp.lt.s32.totalorder %v426, 0
        %v429 = vsub.s32 0, %v426
        %v430 = vsel %vm428, %v429, %v426
        %vm431 = vcmp.lt.s32.totalorder %v427, 0
        %v432 = vsub.s32 0, %v427
        %v433 = vsel %vm431, %v432, %v427
        %vm434 = vcmp.eq.s32.totalorder %v430, 1
        %vm435 = vcmp.eq.s32.totalorder %v433, 1
        %v436 = vsel %vm434, 1, 0
        %v437 = vsel %vm435, 1, 0
        %v438 = vrot.slane %v436, 1
        %v439 = vrot.slane %v437, 1
        %vm440 = vcmp.ne.s32.totalorder %v438, 0
        %vm441 = vcmp.ne.s32.totalorder %v439, 0
        %vm442 = vmand %vm424, %vm440
        %vm443 = vmand %vm425, %vm441
        %v444 = vsel %vm442, 1, 0
        %v445 = vsel %vm443, 1, 0
        %v446 = vcvt.s32.f32 %v444
        %v447 = vcvt.s32.f32 %v445
        %v448 = vperm.slane %v446, 0
        %v449 = vperm.slane %v447, 0
        %v450 = vld [vmem:[#allocation3] sm:$0xff]
        %v451 = vld [vmem:[#allocation3 + $0x8] sm:$0xff]
        %v452 = vmul.f32 %v450, %v363
        %v453 = vmul.f32 %v451, %v364
        %v454 = vsel %vm294, 1, 0
        %v455 = vsel %vm295, 1, 0
        %v456 = vcvt.s32.f32 %v454
        %v457 = vcvt.s32.f32 %v455
        %v458 = vmul.f32 %v452, %v456
        %v459 = vmul.f32 %v453, %v457
        %v460 = vrot.slane %v458, 4
        %v461 = vadd.f32 %v458, %v460
        %v462 = vrot.slane %v461, 2
        %v463 = vadd.f32 %v461, %v462
        %v464 = vrot.slane %v463, 1
        %v465 = vadd.f32 %v463, %v464
        %v466 = vrot.slane %v459, 4
        %v467 = vadd.f32 %v459, %v466
        %v468 = vrot.slane %v467, 2
        %v469 = vadd.f32 %v467, %v468
        %v470 = vrot.slane %v469, 1
        %v471 = vadd.f32 %v469, %v470
        %v472 = vrot.slane %v452, 4
        %v473 = vadd.f32 %v452, %v472
        %v474 = vrot.slane %v473, 2
        %v475 = vadd.f32 %v473, %v474
        %v476 = vrot.slane %v475, 1
        %v477 = vadd.f32 %v475, %v476
        %v478 = vrot.slane %v453, 4
        %v479 = vadd.f32 %v453, %v478
        %v480 = vrot.slane %v479, 2
        %v481 = vadd.f32 %v479, %v480
        %v482 = vrot.slane %v481, 1
        %v483 = vadd.f32 %v481, %v482
        %v484 = vrot.slane %v456, 4
        %v485 = vadd.f32 %v456, %v484
        %v486 = vrot.slane %v485, 2
        %v487 = vadd.f32 %v485, %v486
        %v488 = vrot.slane %v487, 1
        %v489 = vadd.f32 %v487, %v488
        %v490 = vrot.slane %v457, 4
        %v491 = vadd.f32 %v457, %v490
        %v492 = vrot.slane %v491, 2
        %v493 = vadd.f32 %v491, %v492
        %v494 = vrot.slane %v493, 1
        %v495 = vadd.f32 %v493, %v494
        %v498 = vrot.slane %v452, 7
        %v499 = vrot.slane %v453, 7
        %v502 = vsub.f32 %v452, %v498
        %v503 = vsub.f32 %v453, %v499
        %v504 = vand.u32 2147483647, %v502
        %v505 = vand.u32 2147483647, %v503
        %v508 = vrot.slane %v504, 1
        %v509 = vrot.slane %v505, 1
        %vm512 = vcmask 1046528
        %v513 = vsel %vm512, %v508, 0.0
        %v514 = vrot.slane %v513, 4
        %v515 = vadd.f32 %v513, %v514
        %v516 = vrot.slane %v515, 2
        %v517 = vadd.f32 %v515, %v516
        %v518 = vrot.slane %v517, 1
        %v519 = vadd.f32 %v517, %v518
        %v520 = vsel %vm512, %v509, 0.0
        %v521 = vrot.slane %v520, 4
        %v522 = vadd.f32 %v520, %v521
        %v523 = vrot.slane %v522, 2
        %v524 = vadd.f32 %v522, %v523
        %v525 = vrot.slane %v524, 1
        %v526 = vadd.f32 %v524, %v525
        %v527 = vadd.f32 %v519, 0.0
        %v528 = vadd.f32 %v526, 0.0
        %529 = vrot.lane.b32.xlu0 %v452, 16
        %v530 = vpop.permute.xlu0 %529
        %531 = vrot.lane.b32.xlu0 %v453, 16
        %v532 = vpop.permute.xlu0 %531
        %v533 = vsel %vm421, %v530, %v532
        %v534 = vsel %vm421, %v532, %v530
        %v535 = vsub.f32 %v534, %v452
        %v536 = vsub.f32 %v533, %v453
        %v537 = vand.u32 2147483647, %v535
        %v538 = vand.u32 2147483647, %v536
        %v539 = vmul.f32 %v537, %v448
        %v540 = vmul.f32 %v538, %v449
        %v541 = vrot.slane %v539, 4
        %v542 = vadd.f32 %v539, %v541
        %v543 = vrot.slane %v542, 2
        %v544 = vadd.f32 %v542, %v543
        %v545 = vrot.slane %v544, 1
        %v546 = vadd.f32 %v544, %v545
        %v547 = vrot.slane %v540, 4
        %v548 = vadd.f32 %v540, %v547
        %v549 = vrot.slane %v548, 2
        %v550 = vadd.f32 %v548, %v549
        %v551 = vrot.slane %v550, 1
        %v552 = vadd.f32 %v550, %v551
        %v553 = vadd.f32 %v546, 0.0
        %v554 = vadd.f32 %v552, 0.0
        %555 = vrot.lane.b32.xlu0 %v452, 1
        %v556 = vpop.permute.xlu0 %555
        %557 = vrot.lane.b32.xlu0 %v453, 1
        %v558 = vpop.permute.xlu0 %557
        %v559 = vsel %vm381, %v556, %v558
        %v560 = vsel %vm381, %v558, %v556
        %v561 = vsub.f32 %v560, %v452
        %v562 = vsub.f32 %v559, %v453
        %v563 = vand.u32 2147483647, %v561
        %v564 = vand.u32 2147483647, %v562
        %v565 = vmul.f32 %v563, %v412
        %v566 = vmul.f32 %v564, %v413
        %v567 = vrot.slane %v565, 4
        %v568 = vadd.f32 %v565, %v567
        %v569 = vrot.slane %v568, 2
        %v570 = vadd.f32 %v568, %v569
        %v571 = vrot.slane %v570, 1
        %v572 = vadd.f32 %v570, %v571
        %v573 = vrot.slane %v566, 4
        %v574 = vadd.f32 %v566, %v573
        %v575 = vrot.slane %v574, 2
        %v576 = vadd.f32 %v574, %v575
        %v577 = vrot.slane %v576, 1
        %v578 = vadd.f32 %v576, %v577
        %v579 = vadd.f32 %v572, 0.0
        %v580 = vadd.f32 %v578, 0.0
        %v581 = vld [vmem:[%s308] sm:$0xff]
        %v582 = vld [vmem:[%s308 + $0x8] sm:$0xff]
        %v583 = vmul.f32 %v581, %v363
        %v584 = vmul.f32 %v582, %v364
        %v585 = vsel %vm313, 1, 0
        %v586 = vsel %vm314, 1, 0
        %v587 = vcvt.s32.f32 %v585
        %v588 = vcvt.s32.f32 %v586
        %v589 = vmul.f32 %v583, %v587
        %v590 = vmul.f32 %v584, %v588
        %v591 = vrot.slane %v589, 4
        %v592 = vadd.f32 %v589, %v591
        %v593 = vrot.slane %v592, 2
        %v594 = vadd.f32 %v592, %v593
        %v595 = vrot.slane %v594, 1
        %v596 = vadd.f32 %v594, %v595
        %v597 = vrot.slane %v590, 4
        %v598 = vadd.f32 %v590, %v597
        %v599 = vrot.slane %v598, 2
        %v600 = vadd.f32 %v598, %v599
        %v601 = vrot.slane %v600, 1
        %v602 = vadd.f32 %v600, %v601
        %v603 = vrot.slane %v583, 4
        %v604 = vadd.f32 %v583, %v603
        %v605 = vrot.slane %v604, 2
        %v606 = vadd.f32 %v604, %v605
        %v607 = vrot.slane %v606, 1
        %v608 = vadd.f32 %v606, %v607
        %v609 = vrot.slane %v584, 4
        %v610 = vadd.f32 %v584, %v609
        %v611 = vrot.slane %v610, 2
        %v612 = vadd.f32 %v610, %v611
        %v613 = vrot.slane %v612, 1
        %v614 = vadd.f32 %v612, %v613
        %v615 = vrot.slane %v587, 4
        %v616 = vadd.f32 %v587, %v615
        %v617 = vrot.slane %v616, 2
        %v618 = vadd.f32 %v616, %v617
        %v619 = vrot.slane %v618, 1
        %v620 = vadd.f32 %v618, %v619
        %v621 = vrot.slane %v588, 4
        %v622 = vadd.f32 %v588, %v621
        %v623 = vrot.slane %v622, 2
        %v624 = vadd.f32 %v622, %v623
        %v625 = vrot.slane %v624, 1
        %v626 = vadd.f32 %v624, %v625
        %v629 = vrot.slane %v583, 7
        %v630 = vrot.slane %v584, 7
        %v633 = vsub.f32 %v583, %v629
        %v634 = vsub.f32 %v584, %v630
        %v635 = vand.u32 2147483647, %v633
        %v636 = vand.u32 2147483647, %v634
        %v639 = vrot.slane %v635, 1
        %v640 = vrot.slane %v636, 1
        %v643 = vsel %vm512, %v639, 0.0
        %v644 = vrot.slane %v643, 4
        %v645 = vadd.f32 %v643, %v644
        %v646 = vrot.slane %v645, 2
        %v647 = vadd.f32 %v645, %v646
        %v648 = vrot.slane %v647, 1
        %v649 = vadd.f32 %v647, %v648
        %v650 = vsel %vm512, %v640, 0.0
        %v651 = vrot.slane %v650, 4
        %v652 = vadd.f32 %v650, %v651
        %v653 = vrot.slane %v652, 2
        %v654 = vadd.f32 %v652, %v653
        %v655 = vrot.slane %v654, 1
        %v656 = vadd.f32 %v654, %v655
        %v657 = vadd.f32 %v527, %v649
        %v658 = vadd.f32 %v528, %v656
        %659 = vrot.lane.b32.xlu0 %v583, 16
        %v660 = vpop.permute.xlu0 %659
        %661 = vrot.lane.b32.xlu0 %v584, 16
        %v662 = vpop.permute.xlu0 %661
        %v663 = vsel %vm421, %v660, %v662
        %v664 = vsel %vm421, %v662, %v660
        %v665 = vsub.f32 %v664, %v583
        %v666 = vsub.f32 %v663, %v584
        %v667 = vand.u32 2147483647, %v665
        %v668 = vand.u32 2147483647, %v666
        %v669 = vmul.f32 %v667, %v448
        %v670 = vmul.f32 %v668, %v449
        %v671 = vrot.slane %v669, 4
        %v672 = vadd.f32 %v669, %v671
        %v673 = vrot.slane %v672, 2
        %v674 = vadd.f32 %v672, %v673
        %v675 = vrot.slane %v674, 1
        %v676 = vadd.f32 %v674, %v675
        %v677 = vrot.slane %v670, 4
        %v678 = vadd.f32 %v670, %v677
        %v679 = vrot.slane %v678, 2
        %v680 = vadd.f32 %v678, %v679
        %v681 = vrot.slane %v680, 1
        %v682 = vadd.f32 %v680, %v681
        %v683 = vadd.f32 %v553, %v676
        %v684 = vadd.f32 %v554, %v682
        %685 = vrot.lane.b32.xlu0 %v583, 1
        %v686 = vpop.permute.xlu0 %685
        %687 = vrot.lane.b32.xlu0 %v584, 1
        %v688 = vpop.permute.xlu0 %687
        %v689 = vsel %vm381, %v686, %v688
        %v690 = vsel %vm381, %v688, %v686
        %v691 = vsub.f32 %v690, %v583
        %v692 = vsub.f32 %v689, %v584
        %v693 = vand.u32 2147483647, %v691
        %v694 = vand.u32 2147483647, %v692
        %v695 = vmul.f32 %v693, %v412
        %v696 = vmul.f32 %v694, %v413
        %v697 = vrot.slane %v695, 4
        %v698 = vadd.f32 %v695, %v697
        %v699 = vrot.slane %v698, 2
        %v700 = vadd.f32 %v698, %v699
        %v701 = vrot.slane %v700, 1
        %v702 = vadd.f32 %v700, %v701
        %v703 = vrot.slane %v696, 4
        %v704 = vadd.f32 %v696, %v703
        %v705 = vrot.slane %v704, 2
        %v706 = vadd.f32 %v704, %v705
        %v707 = vrot.slane %v706, 1
        %v708 = vadd.f32 %v706, %v707
        %v709 = vadd.f32 %v579, %v702
        %v710 = vadd.f32 %v580, %v708
        %v711 = vld [vmem:[%s327] sm:$0xff]
        %v712 = vld [vmem:[%s327 + $0x8] sm:$0xff]
        %v713 = vmul.f32 %v711, %v363
        %v714 = vmul.f32 %v712, %v364
        %v715 = vsel %vm332, 1, 0
        %v716 = vsel %vm333, 1, 0
        %v717 = vcvt.s32.f32 %v715
        %v718 = vcvt.s32.f32 %v716
        %v719 = vmul.f32 %v713, %v717
        %v720 = vmul.f32 %v714, %v718
        %v721 = vrot.slane %v719, 4
        %v722 = vadd.f32 %v719, %v721
        %v723 = vrot.slane %v722, 2
        %v724 = vadd.f32 %v722, %v723
        %v725 = vrot.slane %v724, 1
        %v726 = vadd.f32 %v724, %v725
        %v727 = vrot.slane %v720, 4
        %v728 = vadd.f32 %v720, %v727
        %v729 = vrot.slane %v728, 2
        %v730 = vadd.f32 %v728, %v729
        %v731 = vrot.slane %v730, 1
        %v732 = vadd.f32 %v730, %v731
        %v733 = vrot.slane %v713, 4
        %v734 = vadd.f32 %v713, %v733
        %v735 = vrot.slane %v734, 2
        %v736 = vadd.f32 %v734, %v735
        %v737 = vrot.slane %v736, 1
        %v738 = vadd.f32 %v736, %v737
        %v739 = vrot.slane %v714, 4
        %v740 = vadd.f32 %v714, %v739
        %v741 = vrot.slane %v740, 2
        %v742 = vadd.f32 %v740, %v741
        %v743 = vrot.slane %v742, 1
        %v744 = vadd.f32 %v742, %v743
        %v745 = vrot.slane %v717, 4
        %v746 = vadd.f32 %v717, %v745
        %v747 = vrot.slane %v746, 2
        %v748 = vadd.f32 %v746, %v747
        %v749 = vrot.slane %v748, 1
        %v750 = vadd.f32 %v748, %v749
        %v751 = vrot.slane %v718, 4
        %v752 = vadd.f32 %v718, %v751
        %v753 = vrot.slane %v752, 2
        %v754 = vadd.f32 %v752, %v753
        %v755 = vrot.slane %v754, 1
        %v756 = vadd.f32 %v754, %v755
        %v759 = vrot.slane %v713, 7
        %v760 = vrot.slane %v714, 7
        %v763 = vsub.f32 %v713, %v759
        %v764 = vsub.f32 %v714, %v760
        %v765 = vand.u32 2147483647, %v763
        %v766 = vand.u32 2147483647, %v764
        %v769 = vrot.slane %v765, 1
        %v770 = vrot.slane %v766, 1
        %v773 = vsel %vm512, %v769, 0.0
        %v774 = vrot.slane %v773, 4
        %v775 = vadd.f32 %v773, %v774
        %v776 = vrot.slane %v775, 2
        %v777 = vadd.f32 %v775, %v776
        %v778 = vrot.slane %v777, 1
        %v779 = vadd.f32 %v777, %v778
        %v780 = vsel %vm512, %v770, 0.0
        %v781 = vrot.slane %v780, 4
        %v782 = vadd.f32 %v780, %v781
        %v783 = vrot.slane %v782, 2
        %v784 = vadd.f32 %v782, %v783
        %v785 = vrot.slane %v784, 1
        %v786 = vadd.f32 %v784, %v785
        %v787 = vadd.f32 %v657, %v779
        %v788 = vadd.f32 %v658, %v786
        %789 = vrot.lane.b32.xlu0 %v713, 16
        %v790 = vpop.permute.xlu0 %789
        %791 = vrot.lane.b32.xlu0 %v714, 16
        %v792 = vpop.permute.xlu0 %791
        %v793 = vsel %vm421, %v790, %v792
        %v794 = vsel %vm421, %v792, %v790
        %v795 = vsub.f32 %v794, %v713
        %v796 = vsub.f32 %v793, %v714
        %v797 = vand.u32 2147483647, %v795
        %v798 = vand.u32 2147483647, %v796
        %v799 = vmul.f32 %v797, %v448
        %v800 = vmul.f32 %v798, %v449
        %v801 = vrot.slane %v799, 4
        %v802 = vadd.f32 %v799, %v801
        %v803 = vrot.slane %v802, 2
        %v804 = vadd.f32 %v802, %v803
        %v805 = vrot.slane %v804, 1
        %v806 = vadd.f32 %v804, %v805
        %v807 = vrot.slane %v800, 4
        %v808 = vadd.f32 %v800, %v807
        %v809 = vrot.slane %v808, 2
        %v810 = vadd.f32 %v808, %v809
        %v811 = vrot.slane %v810, 1
        %v812 = vadd.f32 %v810, %v811
        %v813 = vadd.f32 %v683, %v806
        %v814 = vadd.f32 %v684, %v812
        %815 = vrot.lane.b32.xlu0 %v713, 1
        %v816 = vpop.permute.xlu0 %815
        %817 = vrot.lane.b32.xlu0 %v714, 1
        %v818 = vpop.permute.xlu0 %817
        %v819 = vsel %vm381, %v816, %v818
        %v820 = vsel %vm381, %v818, %v816
        %v821 = vsub.f32 %v820, %v713
        %v822 = vsub.f32 %v819, %v714
        %v823 = vand.u32 2147483647, %v821
        %v824 = vand.u32 2147483647, %v822
        %v825 = vmul.f32 %v823, %v412
        %v826 = vmul.f32 %v824, %v413
        %v827 = vrot.slane %v825, 4
        %v828 = vadd.f32 %v825, %v827
        %v829 = vrot.slane %v828, 2
        %v830 = vadd.f32 %v828, %v829
        %v831 = vrot.slane %v830, 1
        %v832 = vadd.f32 %v830, %v831
        %v833 = vrot.slane %v826, 4
        %v834 = vadd.f32 %v826, %v833
        %v835 = vrot.slane %v834, 2
        %v836 = vadd.f32 %v834, %v835
        %v837 = vrot.slane %v836, 1
        %v838 = vadd.f32 %v836, %v837
        %v839 = vadd.f32 %v709, %v832
        %v840 = vadd.f32 %v710, %v838
        %v841 = vld [vmem:[%s346] sm:$0xff]
        %v842 = vld [vmem:[%s346 + $0x8] sm:$0xff]
        %v843 = vmul.f32 %v841, %v363
        %v844 = vmul.f32 %v842, %v364
        %v845 = vsel %vm351, 1, 0
        %v846 = vsel %vm352, 1, 0
        %v847 = vcvt.s32.f32 %v845
        %v848 = vcvt.s32.f32 %v846
        %v849 = vmul.f32 %v843, %v847
        %v850 = vmul.f32 %v844, %v848
        %v851 = vrot.slane %v849, 4
        %v852 = vadd.f32 %v849, %v851
        %v853 = vrot.slane %v852, 2
        %v854 = vadd.f32 %v852, %v853
        %v855 = vrot.slane %v854, 1
        %v856 = vadd.f32 %v854, %v855
        %v857 = vrot.slane %v850, 4
        %v858 = vadd.f32 %v850, %v857
        %v859 = vrot.slane %v858, 2
        %v860 = vadd.f32 %v858, %v859
        %v861 = vrot.slane %v860, 1
        %v862 = vadd.f32 %v860, %v861
        %v863 = vrot.slane %v843, 4
        %v864 = vadd.f32 %v843, %v863
        %v865 = vrot.slane %v864, 2
        %v866 = vadd.f32 %v864, %v865
        %v867 = vrot.slane %v866, 1
        %v868 = vadd.f32 %v866, %v867
        %v869 = vrot.slane %v844, 4
        %v870 = vadd.f32 %v844, %v869
        %v871 = vrot.slane %v870, 2
        %v872 = vadd.f32 %v870, %v871
        %v873 = vrot.slane %v872, 1
        %v874 = vadd.f32 %v872, %v873
        %v875 = vrot.slane %v847, 4
        %v876 = vadd.f32 %v847, %v875
        %v877 = vrot.slane %v876, 2
        %v878 = vadd.f32 %v876, %v877
        %v879 = vrot.slane %v878, 1
        %v880 = vadd.f32 %v878, %v879
        %v881 = vrot.slane %v848, 4
        %v882 = vadd.f32 %v848, %v881
        %v883 = vrot.slane %v882, 2
        %v884 = vadd.f32 %v882, %v883
        %v885 = vrot.slane %v884, 1
        %v886 = vadd.f32 %v884, %v885
        %v889 = vrot.slane %v843, 7
        %v890 = vrot.slane %v844, 7
        %v893 = vsub.f32 %v843, %v889
        %v894 = vsub.f32 %v844, %v890
        %v895 = vand.u32 2147483647, %v893
        %v896 = vand.u32 2147483647, %v894
        %v899 = vrot.slane %v895, 1
        %v900 = vrot.slane %v896, 1
        %v903 = vsel %vm512, %v899, 0.0
        %v904 = vrot.slane %v903, 4
        %v905 = vadd.f32 %v903, %v904
        %v906 = vrot.slane %v905, 2
        %v907 = vadd.f32 %v905, %v906
        %v908 = vrot.slane %v907, 1
        %v909 = vadd.f32 %v907, %v908
        %v910 = vsel %vm512, %v900, 0.0
        %v911 = vrot.slane %v910, 4
        %v912 = vadd.f32 %v910, %v911
        %v913 = vrot.slane %v912, 2
        %v914 = vadd.f32 %v912, %v913
        %v915 = vrot.slane %v914, 1
        %v916 = vadd.f32 %v914, %v915
        %v917 = vadd.f32 %v787, %v909
        %v918 = vadd.f32 %v788, %v916
        %919 = vrot.lane.b32.xlu0 %v843, 16
        %v920 = vpop.permute.xlu0 %919
        %921 = vrot.lane.b32.xlu0 %v844, 16
        %v922 = vpop.permute.xlu0 %921
        %v923 = vsel %vm421, %v920, %v922
        %v924 = vsel %vm421, %v922, %v920
        %v925 = vsub.f32 %v924, %v843
        %v926 = vsub.f32 %v923, %v844
        %v927 = vand.u32 2147483647, %v925
        %v928 = vand.u32 2147483647, %v926
        %v929 = vmul.f32 %v927, %v448
        %v930 = vmul.f32 %v928, %v449
        %v931 = vrot.slane %v929, 4
        %v932 = vadd.f32 %v929, %v931
        %v933 = vrot.slane %v932, 2
        %v934 = vadd.f32 %v932, %v933
        %v935 = vrot.slane %v934, 1
        %v936 = vadd.f32 %v934, %v935
        %v937 = vrot.slane %v930, 4
        %v938 = vadd.f32 %v930, %v937
        %v939 = vrot.slane %v938, 2
        %v940 = vadd.f32 %v938, %v939
        %v941 = vrot.slane %v940, 1
        %v942 = vadd.f32 %v940, %v941
        %v943 = vadd.f32 %v813, %v936
        %v944 = vadd.f32 %v814, %v942
        %945 = vrot.lane.b32.xlu0 %v843, 1
        %v946 = vpop.permute.xlu0 %945
        %947 = vrot.lane.b32.xlu0 %v844, 1
        %v948 = vpop.permute.xlu0 %947
        %v949 = vsel %vm381, %v946, %v948
        %v950 = vsel %vm381, %v948, %v946
        %v951 = vsub.f32 %v950, %v843
        %v952 = vsub.f32 %v949, %v844
        %v953 = vand.u32 2147483647, %v951
        %v954 = vand.u32 2147483647, %v952
        %v955 = vmul.f32 %v953, %v412
        %v956 = vmul.f32 %v954, %v413
        %v957 = vrot.slane %v955, 4
        %v958 = vadd.f32 %v955, %v957
        %v959 = vrot.slane %v958, 2
        %v960 = vadd.f32 %v958, %v959
        %v961 = vrot.slane %v960, 1
        %v962 = vadd.f32 %v960, %v961
        %v963 = vrot.slane %v956, 4
        %v964 = vadd.f32 %v956, %v963
        %v965 = vrot.slane %v964, 2
        %v966 = vadd.f32 %v964, %v965
        %v967 = vrot.slane %v966, 1
        %v968 = vadd.f32 %v966, %v967
        %v969 = vadd.f32 %v839, %v962
        %v970 = vadd.f32 %v840, %v968
        %v971 = vsub.f32 %v369, %v355
        %v972 = vsub.f32 %v370, %v356
        %v973 = vrot.slane %v971, 4
        %v974 = vadd.f32 %v971, %v973
        %v975 = vrot.slane %v974, 2
        %v976 = vadd.f32 %v974, %v975
        %v977 = vrot.slane %v976, 1
        %v978 = vadd.f32 %v976, %v977
        %v979 = vrot.slane %v972, 4
        %v980 = vadd.f32 %v972, %v979
        %v981 = vrot.slane %v980, 2
        %v982 = vadd.f32 %v980, %v981
        %v983 = vrot.slane %v982, 1
        %v984 = vadd.f32 %v982, %v983
        %vm985 = vcmask 1040384
        %v986 = vsel %vm985, %v465, %v596
        %v987 = vsel %vm985, %v471, %v602
        %vm988 = vcmask 1041408
        %v989 = vsel %vm988, %v986, %v726
        %v990 = vsel %vm988, %v987, %v732
        %vm991 = vcmask 1042432
        %v992 = vsel %vm991, %v989, %v856
        %v993 = vsel %vm991, %v990, %v862
        %vm994 = vcmask 1043456
        %v995 = vsel %vm994, %v992, %v477
        %v996 = vsel %vm994, %v993, %v483
        %vm997 = vcmask 1044480
        %v998 = vsel %vm997, %v995, %v608
        %v999 = vsel %vm997, %v996, %v614
        %vm1000 = vcmask 1045504
        %v1001 = vsel %vm1000, %v998, %v738
        %v1002 = vsel %vm1000, %v999, %v744
        %v1003 = vsel %vm512, %v1001, %v868
        %v1004 = vsel %vm512, %v1002, %v874
        %v1005 = vsel %vm985, %v489, %v620
        %v1006 = vsel %vm985, %v495, %v626
        %v1007 = vsel %vm988, %v1005, %v750
        %v1008 = vsel %vm988, %v1006, %v756
        %v1009 = vsel %vm991, %v1007, %v880
        %v1010 = vsel %vm991, %v1008, %v886
        %v1011 = vsel %vm994, %v1009, %v978
        %v1012 = vsel %vm994, %v1010, %v984
        %v1013 = vsel %vm997, %v1011, %v917
        %v1014 = vsel %vm997, %v1012, %v918
        %v1015 = vsel %vm1000, %v1013, %v943
        %v1016 = vsel %vm1000, %v1014, %v944
        %v1017 = vsel %vm512, %v1015, %v969
        %v1018 = vsel %vm512, %v1016, %v970
        %1019 = vst [vmem:[%s264] sm:$0xff] %v1003
        %1020 = vst [vmem:[%s264 + $0x8] sm:$0xff] %v1004
        %1021 = vst [vmem:[%s264 + $0x10] sm:$0xff] %v1017
        %1022 = vst [vmem:[%s264 + $0x18] sm:$0xff] %v1018
        %s1023 = sand.u32 %s120, 1
        %s1024 = scalar_lea.sflag [#allocation6], %s1023
        %s1025 = sand.u32 %s120, 1
        %s1026 = smul.addr %s1025, 32
        %s1027 = scalar_lea.vmem [#allocation10], %s1026
        // Predicated region
        $region45: #{tpu_custom_call.1} parent=31 // pred_check
          %p1028 = pneg %p130
        $region46: #{tpu_custom_call.1} parent=31 // pred_check_branch
          %1030 = sbr.rel (%p1028) target = $region48
        $region47: #{tpu_custom_call.1} parent=31 // pred_region
          %1032 = vsyncadd %s1024, 0
          %s1033 = smul.addr %s27, 4
          %s1034 = smul.addr %s1033, 8
          %s1035 = scalar_lea.hbm %s3, %s1034
          %s1036 = sshll.u32 %s1027, 4
          %s1037 = int_to_ptr.vmem [resolvable:$true] %s1036
          %s1038 = sshll.u32 %s1035, 4
          %s1039 = int_to_ptr.hbm [resolvable:$true] %s1038
          %1044 = dma.vmem_to_hbm [thread:$0]  %s1037, 512, %s1039, %s1024, 256, 256, 16
        $region48: #{tpu_custom_call.1} parent=31 // pred_fallthru
          _
      $region32: #{tpu_custom_call.1} parent=5 // pred_fallthru
        _
      %p1045 = scmp.le.s32.totalorder 2, %s18
      // Predicated region
      $region49: #{tpu_custom_call.1} parent=5 // pred_check
        %p1046 = pneg %p1045
      $region50: #{tpu_custom_call.1} parent=5 // pred_check_branch
        %1048 = sbr.rel (%p1046) target = $region52
      $region51: #{tpu_custom_call.1} parent=5 // pred_region
        %s1049 = ssub.s32 %s18, 2
        // Predicated region
        $region53: #{tpu_custom_call.1} parent=51 // pred_check
          %p1050 = pneg %p136
        $region54: #{tpu_custom_call.1} parent=51 // pred_check_branch
          %1052 = sbr.rel (%p1050) target = $region56
        $region55: #{tpu_custom_call.1} parent=51 // pred_region
          %s1053 = sand.u32 %s121, 1
          %s1054 = scalar_lea.sflag [#allocation6], %s1053
          %s1055 = sand.u32 %s121, 1
          %s1056 = smul.addr %s1055, 32
          %s1057 = scalar_lea.vmem [#allocation10], %s1056
          %1059 = dma.done %s1054, 512
        $region56: #{tpu_custom_call.1} parent=51 // pred_fallthru
          _
      $region52: #{tpu_custom_call.1} parent=5 // pred_fallthru
        _
    $region6: #{tpu_custom_call.1} parent=1 // loop_footer
      %s22 = sadd.s32 1, %s18
    $region7: #{tpu_custom_call.1} parent=1 // loop_footer_branch
      %17 = sbr.rel target = $region3
    $region8: #{tpu_custom_call.1} parent=1 // loop_exit
      _
    %1060 = vsyncpa [#allocation5], 1
    %s1061 = scalar_lea.sflag [#allocation5], 1
    %1062 = vsyncpa %s1061, 1
    %1063 = vsyncpa [#allocation8], 1
    %s1064 = scalar_lea.sflag [#allocation8], 1
    %1065 = vsyncpa %s1064, 1
    %1066 = vsyncpa [#allocation6], 1
    %s1067 = scalar_lea.sflag [#allocation6], 1
    %1068 = vsyncpa %s1067, 1

</llo_original>
